<compile_context>
chip_gen: v7x
topology: tpu7x:2x2x1
jax: 0.10.0
libtpu: 0.0.40
codegen_flags: <defaults>
</compile_context>

<pallas_src>
import jax
import jax.numpy as jnp
from jax.experimental import pallas as pl
from jax.experimental.pallas import tpu as pltpu

MAX_TILE_P = 2048  # upper bound on pixels per grid step (lane axis)


def _attention_gate_kernel(
    g_ref, x_ref,            # (1, F_g, TILE_P), (1, F_l, TILE_P)  [compute dtype]
    wg_ref, wx_ref,          # (F_int, F_g), (F_int, F_l)  -- BN scale pre-folded
    wp_ref,                  # (F_int, 1)  f32             -- BN scale pre-folded
    bg_ref, bx_ref,          # (F_int, 1)  f32 folded-BN biases
    bp_ref,                  # (1, 1)      f32 folded-BN bias for psi branch
    out_ref,                 # (1, F_int, TILE_P)
):
    g = g_ref[0]             # (F_g, TILE_P)
    x = x_ref[0]             # (F_l, TILE_P)

    # 1x1 conv == channel matmul on the MXU; bf16 operands, f32 accumulation.
    x1 = jnp.dot(wx_ref[...], x, preferred_element_type=jnp.float32) + bx_ref[...]
    g1 = jnp.dot(wg_ref[...], g, preferred_element_type=jnp.float32)
    a = jnp.maximum(g1 + x1 + bg_ref[...], 0.0)            # relu(g1 + x1), f32

    # psi branch: (F_int -> 1) conv as elementwise mul + sublane reduce (off-MXU).
    # (If VALU-bound on v5e this could move onto the MXU; kernel is mem-bound.)
    psi_pre = jnp.sum(a * wp_ref[...], axis=0, keepdims=True) + bp_ref[...]
    psi = jax.nn.sigmoid(psi_pre)                           # (1, TILE_P), f32 (EUP)

    out_ref[0] = (x1 * psi).astype(out_ref.dtype)           # lane-dense store


def _vmem_capacity_bytes():
    try:
        cap = getattr(pltpu.get_tpu_info(), "vmem_capacity_bytes", None)
        if cap:
            return int(cap)
    except Exception:
        pass
    return 64 << 20  # conservative fallback: v7x per-TensorCore VMEM


def _select_tile(HW, N, F_g, F_l, F_int, act_bytes, out_bytes, w_bytes, vmem_cap):
    """Pick (tile_p, hw_pad, vmem_estimate).

    Prefers tiles that divide HW exactly (no pad / no output-slice HBM pass),
    fit the scoped-VMEM budget, and leave >= 2 grid steps (v7x megacore)."""
    def est(t):
        io = 2 * t * (F_g + F_l) * act_bytes + 2 * t * F_int * out_bytes
        wts = 2 * (F_int * (F_g + F_l) * w_bytes + (3 * F_int + 2) * 4)
        interm = 4 * F_int * t * 4          # x1, g1, a, a*wp live in f32
        return io + wts + interm + (2 << 20)

    exact = sorted({t for t in (2048, 1024, 512, 384, 256, 128, HW)
                    if 0 < t <= MAX_TILE_P and t % 128 == 0 and HW % t == 0},
                   reverse=True)
    if exact:
        cands = [(t, HW) for t in exact]
    else:
        # Ragged HW fallback: zero-pad pixels to a tile multiple (extra HBM
        # pass; not hit by this Unet's power-of-two spatial sizes).
        base = [t for t in (1024, 512, 256, 128) if t <= pl.cdiv(HW, 128) * 128]
        base = base or [128]
        cands = [(t, pl.cdiv(HW, t) * t) for t in base]

    tile_p, hw_pad = cands[-1]              # smallest tile as last resort
    for t, hp in cands:
        steps = N * (hp // t)
        if est(t) <= vmem_cap and steps >= 2:
            tile_p, hw_pad = t, hp
            break
    return tile_p, hw_pad, est(tile_p)


def attention_gate_pallas(g, x, params, compute_dtype=jnp.bfloat16):
    """g: (N, F_g, H, W), x: (N, F_l, H, W) in NCHW. Returns (N, F_int, H, W)."""
    N, F_g, H, W = g.shape
    _, F_l, _, _ = x.shape
    F_int = params["wg"].shape[0]
    out_dtype = x.dtype

    HW = H * W
    act_bytes = jnp.dtype(compute_dtype).itemsize
    out_bytes = jnp.dtype(out_dtype).itemsize

    # Generation-aware scoped-VMEM budget (~48 MiB on v7x, ~96 MiB on v5e/v6e).
    vmem_cap = min(int(_vmem_capacity_bytes() * 3 // 4), 100 << 20)
    tile_p, hw_pad, est = _select_tile(
        HW, N, F_g, F_l, F_int, act_bytes, out_bytes, act_bytes, vmem_cap)
    vmem_limit = int(min(max(est, 16 << 20), vmem_cap))

    # Pure reshapes in NCHW (no transposes); cast to the bf16 data path.
    # (In an end-to-end bf16 model the producers would already emit bf16.)
    g3 = g.reshape(N, F_g, HW).astype(compute_dtype)
    x3 = x.reshape(N, F_l, HW).astype(compute_dtype)
    if hw_pad != HW:
        g3 = jnp.pad(g3, ((0, 0), (0, 0), (0, hw_pad - HW)))
        x3 = jnp.pad(x3, ((0, 0), (0, 0), (0, hw_pad - HW)))

    f32 = jnp.float32
    # Fold BN scale into the conv weights:  (W @ X) * s  ==  (W * s) @ X.
    wg_f = (params["wg"] * params["scale_g"][:, None]).astype(compute_dtype)
    wx_f = (params["wx"] * params["scale_x"][:, None]).astype(compute_dtype)
    wp_f = (params["wp"] * params["scale_p"][0]).reshape(F_int, 1).astype(f32)
    bg = params["bias_g"].reshape(F_int, 1).astype(f32)
    bx = params["bias_x"].reshape(F_int, 1).astype(f32)
    bp = params["bias_p"].reshape(1, 1).astype(f32)

    grid = (N, hw_pad // tile_p)

    def build_and_call(single_buffer_consts):
        if single_buffer_consts:
            const = lambda s: pl.BlockSpec(s, lambda n, p: (0, 0),
                                           pipeline_mode=pl.Buffered(1))
        else:
            const = lambda s: pl.BlockSpec(s, lambda n, p: (0, 0))
        return pl.pallas_call(
            _attention_gate_kernel,
            out_shape=jax.ShapeDtypeStruct((N, F_int, hw_pad), out_dtype),
            grid_spec=pltpu.PrefetchScalarGridSpec(
                num_scalar_prefetch=0,
                grid=grid,
                in_specs=[
                    pl.BlockSpec((1, F_g, tile_p), lambda n, p: (n, 0, p)),
                    pl.BlockSpec((1, F_l, tile_p), lambda n, p: (n, 0, p)),
                    const((F_int, F_g)),
                    const((F_int, F_l)),
                    const((F_int, 1)),
                    const((F_int, 1)),
                    const((F_int, 1)),
                    const((1, 1)),
                ],
                out_specs=pl.BlockSpec((1, F_int, tile_p),
                                       lambda n, p: (n, 0, p)),
            ),
            compiler_params=pltpu.CompilerParams(
                dimension_semantics=("parallel", "parallel"),
                vmem_limit_bytes=vmem_limit),
        )(g3, x3, wg_f, wx_f, wp_f, bg, bx, bp)

    try:
        out3 = build_and_call(True)
    except Exception:
        # pipeline_mode=pl.Buffered(1) not supported on this build; the only
        # cost is one extra (small) weight buffer in VMEM.
        out3 = build_and_call(False)

    if hw_pad != HW:
        out3 = out3[:, :, :HW]
    return out3.reshape(N, F_int, H, W)


def _fold_bn(gamma, beta, mean, var, eps=1e-5):
    scale = gamma / jnp.sqrt(var + eps)
    bias = beta - mean * scale
    return scale, bias


def make_params(key, F_g, F_l, F_int):
    ks = jax.random.split(key, 6)
    # PyTorch conv weight is (out, in, 1, 1); store flattened as (out, in).
    wg = jax.random.normal(ks[0], (F_int, F_g), jnp.float32) * 0.2
    wx = jax.random.normal(ks[1], (F_int, F_l), jnp.float32) * 0.2
    wp = jax.random.normal(ks[2], (F_int,), jnp.float32) * 0.2   # (1, F_int) conv
    mkbn = lambda k, c: (
        1.0 + 0.1 * jax.random.normal(jax.random.fold_in(k, 0), (c,), jnp.float32),
        0.1 * jax.random.normal(jax.random.fold_in(k, 1), (c,), jnp.float32),
        0.05 * jax.random.normal(jax.random.fold_in(k, 2), (c,), jnp.float32),
        1.0 + 0.1 * jnp.abs(jax.random.normal(jax.random.fold_in(k, 3), (c,),
                                              jnp.float32)),
    )
    sg, bg = _fold_bn(*mkbn(ks[3], F_int))
    sx, bx = _fold_bn(*mkbn(ks[4], F_int))
    sp, bp = _fold_bn(*mkbn(ks[5], 1))
    return dict(wg=wg, wx=wx, wp=wp,
                scale_g=sg, bias_g=bg,
                scale_x=sx, bias_x=bx,
                scale_p=sp, bias_p=bp)


def attention_gate_ref(g, x, params):
    """Pure-JAX NCHW f32 reference (un-folded BN), for correctness check."""
    f32 = jnp.float32
    gf, xf = g.astype(f32), x.astype(f32)
    bcast = lambda v: v[None, :, None, None]
    g1 = (jnp.einsum('oc,nchw->nohw', params["wg"], gf)
          * bcast(params["scale_g"]) + bcast(params["bias_g"]))
    x1 = (jnp.einsum('oc,nchw->nohw', params["wx"], xf)
          * bcast(params["scale_x"]) + bcast(params["bias_x"]))
    a = jnp.maximum(g1 + x1, 0.0)
    psi_pre = (jnp.einsum('c,nchw->nhw', params["wp"], a)[:, None, :, :]
               * params["scale_p"][0] + params["bias_p"][0])
    psi = jax.nn.sigmoid(psi_pre)
    return (x1 * psi).astype(x.dtype)


if __name__ == "__main__":
    key = jax.random.PRNGKey(0)
    N, F_g, F_l, F_int, H, W = 2, 4, 4, 8, 16, 16

    kg, kx, kp = jax.random.split(key, 3)
    g = jax.random.normal(kg, (N, F_g, H, W), jnp.float32)
    x = jax.random.normal(kx, (N, F_l, H, W), jnp.float32)
    params = make_params(kp, F_g, F_l, F_int)

    out = attention_gate_pallas(g, x, params)
    out = jax.block_until_ready(out)

    ref = attention_gate_ref(g, x, params)
    assert out.shape == (N, F_int, H, W)
    # bf16 MXU data path (f32 accumulation) => loosened tolerance vs f32 ref.
    assert jnp.allclose(out.astype(jnp.float32), ref.astype(jnp.float32),
                        atol=5e-2, rtol=5e-2), "mismatch vs reference"

    print("KERNEL_OK")
</pallas_src>

<mosaic_0001>
module attributes {stable_mosaic.version = 11 : i64} {
  func.func @_attention_gate_kernel(%arg0: i32, %arg1: i32, %arg2: memref<1x4x256xbf16, #tpu.memory_space<vmem>>, %arg3: memref<1x4x256xbf16, #tpu.memory_space<vmem>>, %arg4: memref<8x4xbf16, #tpu.memory_space<vmem>>, %arg5: memref<8x4xbf16, #tpu.memory_space<vmem>>, %arg6: memref<8x1xf32, #tpu.memory_space<vmem>>, %arg7: memref<8x1xf32, #tpu.memory_space<vmem>>, %arg8: memref<8x1xf32, #tpu.memory_space<vmem>>, %arg9: memref<1x1xf32, #tpu.memory_space<vmem>>, %arg10: memref<1x8x256xf32, #tpu.memory_space<vmem>>) attributes {dimension_semantics = [#tpu.dimension_semantics<parallel>, #tpu.dimension_semantics<parallel>], iteration_bounds = array<i64: 2, 1>, scalar_prefetch = 0 : i64, scratch_operands = 0 : i64, tpu.core_type = #tpu.core_type<tc>, window_params = [{transform_indices = @transform_0, window_bounds = array<i64: 1, 4, 256>}, {transform_indices = @transform_1, window_bounds = array<i64: 1, 4, 256>}, {pipeline_mode = #tpu.pipeline_mode<synchronous>, transform_indices = @transform_2, window_bounds = array<i64: 8, 4>}, {pipeline_mode = #tpu.pipeline_mode<synchronous>, transform_indices = @transform_3, window_bounds = array<i64: 8, 4>}, {pipeline_mode = #tpu.pipeline_mode<synchronous>, transform_indices = @transform_4, window_bounds = array<i64: 8, 1>}, {pipeline_mode = #tpu.pipeline_mode<synchronous>, transform_indices = @transform_5, window_bounds = array<i64: 8, 1>}, {pipeline_mode = #tpu.pipeline_mode<synchronous>, transform_indices = @transform_6, window_bounds = array<i64: 8, 1>}, {pipeline_mode = #tpu.pipeline_mode<synchronous>, transform_indices = @transform_7, window_bounds = array<i64: 1, 1>}, {transform_indices = @transform_8, window_bounds = array<i64: 1, 8, 256>}]} {
    %c0 = arith.constant 0 : index
    %c0_0 = arith.constant 0 : index
    %c0_1 = arith.constant 0 : index
    %0 = vector.load %arg2[%c0, %c0_0, %c0_1] : memref<1x4x256xbf16, #tpu.memory_space<vmem>>, vector<1x4x256xbf16>
    %1 = vector.shape_cast %0 : vector<1x4x256xbf16> to vector<4x256xbf16>
    %c0_2 = arith.constant 0 : index
    %c0_3 = arith.constant 0 : index
    %c0_4 = arith.constant 0 : index
    %2 = vector.load %arg3[%c0_2, %c0_3, %c0_4] : memref<1x4x256xbf16, #tpu.memory_space<vmem>>, vector<1x4x256xbf16>
    %3 = vector.shape_cast %2 : vector<1x4x256xbf16> to vector<4x256xbf16>
    %c0_5 = arith.constant 0 : index
    %c0_6 = arith.constant 0 : index
    %4 = vector.load %arg5[%c0_5, %c0_6] : memref<8x4xbf16, #tpu.memory_space<vmem>>, vector<8x4xbf16>
    %cst = arith.constant dense<0.000000e+00> : vector<8x256xf32>
    %5 = tpu.matmul %4, %3, %cst {dimension_numbers = #tpu.dot_dimension_numbers<[1], [0], [0], [1], [0, 0, 1, 1], [], []>} : vector<8x4xbf16>, vector<4x256xbf16>, vector<8x256xf32> -> vector<8x256xf32>
    %c0_7 = arith.constant 0 : index
    %c0_8 = arith.constant 0 : index
    %6 = vector.load %arg8[%c0_7, %c0_8] : memref<8x1xf32, #tpu.memory_space<vmem>>, vector<8x1xf32>
    %7 = vector.broadcast %6 : vector<8x1xf32> to vector<8x256xf32>
    %8 = arith.addf %5, %7 : vector<8x256xf32>
    %c0_9 = arith.constant 0 : index
    %c0_10 = arith.constant 0 : index
    %9 = vector.load %arg4[%c0_9, %c0_10] : memref<8x4xbf16, #tpu.memory_space<vmem>>, vector<8x4xbf16>
    %cst_11 = arith.constant dense<0.000000e+00> : vector<8x256xf32>
    %10 = tpu.matmul %9, %1, %cst_11 {dimension_numbers = #tpu.dot_dimension_numbers<[1], [0], [0], [1], [0, 0, 1, 1], [], []>} : vector<8x4xbf16>, vector<4x256xbf16>, vector<8x256xf32> -> vector<8x256xf32>
    %11 = arith.addf %10, %8 : vector<8x256xf32>
    %c0_12 = arith.constant 0 : index
    %c0_13 = arith.constant 0 : index
    %12 = vector.load %arg7[%c0_12, %c0_13] : memref<8x1xf32, #tpu.memory_space<vmem>>, vector<8x1xf32>
    %13 = vector.broadcast %12 : vector<8x1xf32> to vector<8x256xf32>
    %14 = arith.addf %11, %13 : vector<8x256xf32>
    %cst_14 = arith.constant 0.000000e+00 : f32
    %15 = vector.broadcast %cst_14 : f32 to vector<8x256xf32>
    %16 = arith.maximumf %14, %15 : vector<8x256xf32>
    %c0_15 = arith.constant 0 : index
    %c0_16 = arith.constant 0 : index
    %17 = vector.load %arg6[%c0_15, %c0_16] : memref<8x1xf32, #tpu.memory_space<vmem>>, vector<8x1xf32>
    %18 = vector.broadcast %17 : vector<8x1xf32> to vector<8x256xf32>
    %19 = arith.mulf %16, %18 : vector<8x256xf32>
    %cst_17 = arith.constant dense<0.000000e+00> : vector<256xf32>
    %20 = vector.multi_reduction <add>, %19, %cst_17 [0] : vector<8x256xf32> to vector<256xf32>
    %21 = vector.shape_cast %20 : vector<256xf32> to vector<1x256xf32>
    %c0_18 = arith.constant 0 : index
    %c0_19 = arith.constant 0 : index
    %22 = vector.load %arg9[%c0_18, %c0_19] : memref<1x1xf32, #tpu.memory_space<vmem>>, vector<1x1xf32>
    %23 = vector.broadcast %22 : vector<1x1xf32> to vector<1x256xf32>
    %24 = arith.addf %21, %23 : vector<1x256xf32>
    %25 = arith.negf %24 : vector<1x256xf32>
    %26 = math.exp %25 : vector<1x256xf32>
    %cst_20 = arith.constant 1.000000e+00 : f32
    %27 = vector.broadcast %cst_20 : f32 to vector<1x256xf32>
    %28 = arith.addf %27, %26 : vector<1x256xf32>
    %29 = arith.divf %27, %28 : vector<1x256xf32>
    %30 = vector.broadcast %29 : vector<1x256xf32> to vector<8x256xf32>
    %31 = arith.mulf %8, %30 : vector<8x256xf32>
    %c0_21 = arith.constant 0 : index
    %c0_22 = arith.constant 0 : index
    %c0_23 = arith.constant 0 : index
    %32 = vector.load %arg10[%c0_21, %c0_22, %c0_23] : memref<1x8x256xf32, #tpu.memory_space<vmem>>, vector<1x8x256xf32>
    %33 = vector.shape_cast %32 : vector<1x8x256xf32> to vector<8x256xf32>
    %34 = vector.shape_cast %31 : vector<8x256xf32> to vector<1x8x256xf32>
    tpu.vector_store %arg10[%c0_21, %c0_22, %c0_23], %34 {strides = array<i32>} : memref<1x8x256xf32, #tpu.memory_space<vmem>>, vector<1x8x256xf32>,
    return
  }
  func.func @transform_0(%arg0: i32, %arg1: i32) -> (i32, i32, i32) {
    %c0_i32 = arith.constant 0 : i32
    %c0_i32_0 = arith.constant 0 : i32
    return %arg0, %c0_i32, %arg1 : i32, i32, i32
  }
  func.func @transform_1(%arg0: i32, %arg1: i32) -> (i32, i32, i32) {
    %c0_i32 = arith.constant 0 : i32
    %c0_i32_0 = arith.constant 0 : i32
    return %arg0, %c0_i32, %arg1 : i32, i32, i32
  }
  func.func @transform_2(%arg0: i32, %arg1: i32) -> (i32, i32) {
    %c0_i32 = arith.constant 0 : i32
    %c0_i32_0 = arith.constant 0 : i32
    %c0_i32_1 = arith.constant 0 : i32
    return %c0_i32, %c0_i32_0 : i32, i32
  }
  func.func @transform_3(%arg0: i32, %arg1: i32) -> (i32, i32) {
    %c0_i32 = arith.constant 0 : i32
    %c0_i32_0 = arith.constant 0 : i32
    %c0_i32_1 = arith.constant 0 : i32
    return %c0_i32, %c0_i32_0 : i32, i32
  }
  func.func @transform_4(%arg0: i32, %arg1: i32) -> (i32, i32) {
    %c0_i32 = arith.constant 0 : i32
    %c0_i32_0 = arith.constant 0 : i32
    %c0_i32_1 = arith.constant 0 : i32
    return %c0_i32, %c0_i32_0 : i32, i32
  }
  func.func @transform_5(%arg0: i32, %arg1: i32) -> (i32, i32) {
    %c0_i32 = arith.constant 0 : i32
    %c0_i32_0 = arith.constant 0 : i32
    %c0_i32_1 = arith.constant 0 : i32
    return %c0_i32, %c0_i32_0 : i32, i32
  }
  func.func @transform_6(%arg0: i32, %arg1: i32) -> (i32, i32) {
    %c0_i32 = arith.constant 0 : i32
    %c0_i32_0 = arith.constant 0 : i32
    %c0_i32_1 = arith.constant 0 : i32
    return %c0_i32, %c0_i32_0 : i32, i32
  }
  func.func @transform_7(%arg0: i32, %arg1: i32) -> (i32, i32) {
    %c0_i32 = arith.constant 0 : i32
    %c0_i32_0 = arith.constant 0 : i32
    %c0_i32_1 = arith.constant 0 : i32
    return %c0_i32, %c0_i32_0 : i32, i32
  }
  func.func @transform_8(%arg0: i32, %arg1: i32) -> (i32, i32, i32) {
    %c0_i32 = arith.constant 0 : i32
    %c0_i32_0 = arith.constant 0 : i32
    return %arg0, %c0_i32, %arg1 : i32, i32, i32
  }
}

module attributes {stable_mosaic.version = 11 : i64} {
  func.func @_attention_gate_kernel(%arg0: i32, %arg1: i32, %arg2: memref<1x4x256xbf16, #tpu.memory_space<vmem>>, %arg3: memref<1x4x256xbf16, #tpu.memory_space<vmem>>, %arg4: memref<8x4xbf16, #tpu.memory_space<vmem>>, %arg5: memref<8x4xbf16, #tpu.memory_space<vmem>>, %arg6: memref<8x1xf32, #tpu.memory_space<vmem>>, %arg7: memref<8x1xf32, #tpu.memory_space<vmem>>, %arg8: memref<8x1xf32, #tpu.memory_space<vmem>>, %arg9: memref<1x1xf32, #tpu.memory_space<vmem>>, %arg10: memref<1x8x256xf32, #tpu.memory_space<vmem>>) attributes {dimension_semantics = [#tpu.dimension_semantics<parallel>, #tpu.dimension_semantics<parallel>], iteration_bounds = array<i64: 2, 1>, scalar_prefetch = 0 : i64, scratch_operands = 0 : i64, tpu.core_type = #tpu.core_type<tc>, window_params = [{transform_indices = @transform_0, window_bounds = array<i64: 1, 4, 256>}, {transform_indices = @transform_1, window_bounds = array<i64: 1, 4, 256>}, {pipeline_mode = #tpu.pipeline_mode<synchronous>, transform_indices = @transform_2, window_bounds = array<i64: 8, 4>}, {pipeline_mode = #tpu.pipeline_mode<synchronous>, transform_indices = @transform_3, window_bounds = array<i64: 8, 4>}, {pipeline_mode = #tpu.pipeline_mode<synchronous>, transform_indices = @transform_4, window_bounds = array<i64: 8, 1>}, {pipeline_mode = #tpu.pipeline_mode<synchronous>, transform_indices = @transform_5, window_bounds = array<i64: 8, 1>}, {pipeline_mode = #tpu.pipeline_mode<synchronous>, transform_indices = @transform_6, window_bounds = array<i64: 8, 1>}, {pipeline_mode = #tpu.pipeline_mode<synchronous>, transform_indices = @transform_7, window_bounds = array<i64: 1, 1>}, {transform_indices = @transform_8, window_bounds = array<i64: 1, 8, 256>}]} {
    %c0 = arith.constant 0 : index
    %c0_0 = arith.constant 0 : index
    %c0_1 = arith.constant 0 : index
    %0 = vector.load %arg2[%c0, %c0_0, %c0_1] : memref<1x4x256xbf16, #tpu.memory_space<vmem>>, vector<1x4x256xbf16>
    %1 = vector.shape_cast %0 : vector<1x4x256xbf16> to vector<4x256xbf16>
    %c0_2 = arith.constant 0 : index
    %c0_3 = arith.constant 0 : index
    %c0_4 = arith.constant 0 : index
    %2 = vector.load %arg3[%c0_2, %c0_3, %c0_4] : memref<1x4x256xbf16, #tpu.memory_space<vmem>>, vector<1x4x256xbf16>
    %3 = vector.shape_cast %2 : vector<1x4x256xbf16> to vector<4x256xbf16>
    %c0_5 = arith.constant 0 : index
    %c0_6 = arith.constant 0 : index
    %4 = vector.load %arg5[%c0_5, %c0_6] : memref<8x4xbf16, #tpu.memory_space<vmem>>, vector<8x4xbf16>
    %cst = arith.constant dense<0.000000e+00> : vector<8x256xf32>
    %5 = tpu.matmul %4, %3, %cst {dimension_numbers = #tpu.dot_dimension_numbers<[1], [0], [0], [1], [0, 0, 1, 1], [], []>} : vector<8x4xbf16>, vector<4x256xbf16>, vector<8x256xf32> -> vector<8x256xf32>
    %c0_7 = arith.constant 0 : index
    %c0_8 = arith.constant 0 : index
    %6 = vector.load %arg8[%c0_7, %c0_8] : memref<8x1xf32, #tpu.memory_space<vmem>>, vector<8x1xf32>
    %7 = vector.broadcast %6 : vector<8x1xf32> to vector<8x256xf32>
    %8 = arith.addf %5, %7 : vector<8x256xf32>
    %c0_9 = arith.constant 0 : index
    %c0_10 = arith.constant 0 : index
    %9 = vector.load %arg4[%c0_9, %c0_10] : memref<8x4xbf16, #tpu.memory_space<vmem>>, vector<8x4xbf16>
    %cst_11 = arith.constant dense<0.000000e+00> : vector<8x256xf32>
    %10 = tpu.matmul %9, %1, %cst_11 {dimension_numbers = #tpu.dot_dimension_numbers<[1], [0], [0], [1], [0, 0, 1, 1], [], []>} : vector<8x4xbf16>, vector<4x256xbf16>, vector<8x256xf32> -> vector<8x256xf32>
    %11 = arith.addf %10, %8 : vector<8x256xf32>
    %c0_12 = arith.constant 0 : index
    %c0_13 = arith.constant 0 : index
    %12 = vector.load %arg7[%c0_12, %c0_13] : memref<8x1xf32, #tpu.memory_space<vmem>>, vector<8x1xf32>
    %13 = vector.broadcast %12 : vector<8x1xf32> to vector<8x256xf32>
    %14 = arith.addf %11, %13 : vector<8x256xf32>
    %cst_14 = arith.constant 0.000000e+00 : f32
    %15 = vector.broadcast %cst_14 : f32 to vector<8x256xf32>
    %16 = arith.maximumf %14, %15 : vector<8x256xf32>
    %c0_15 = arith.constant 0 : index
    %c0_16 = arith.constant 0 : index
    %17 = vector.load %arg6[%c0_15, %c0_16] : memref<8x1xf32, #tpu.memory_space<vmem>>, vector<8x1xf32>
    %18 = vector.broadcast %17 : vector<8x1xf32> to vector<8x256xf32>
    %19 = arith.mulf %16, %18 : vector<8x256xf32>
    %cst_17 = arith.constant dense<0.000000e+00> : vector<256xf32>
    %20 = vector.multi_reduction <add>, %19, %cst_17 [0] : vector<8x256xf32> to vector<256xf32>
    %21 = vector.shape_cast %20 : vector<256xf32> to vector<1x256xf32>
    %c0_18 = arith.constant 0 : index
    %c0_19 = arith.constant 0 : index
    %22 = vector.load %arg9[%c0_18, %c0_19] : memref<1x1xf32, #tpu.memory_space<vmem>>, vector<1x1xf32>
    %23 = vector.broadcast %22 : vector<1x1xf32> to vector<1x256xf32>
    %24 = arith.addf %21, %23 : vector<1x256xf32>
    %25 = arith.negf %24 : vector<1x256xf32>
    %26 = math.exp %25 : vector<1x256xf32>
    %cst_20 = arith.constant 1.000000e+00 : f32
    %27 = vector.broadcast %cst_20 : f32 to vector<1x256xf32>
    %28 = arith.addf %27, %26 : vector<1x256xf32>
    %29 = arith.divf %27, %28 : vector<1x256xf32>
    %30 = vector.broadcast %29 : vector<1x256xf32> to vector<8x256xf32>
    %31 = arith.mulf %8, %30 : vector<8x256xf32>
    %c0_21 = arith.constant 0 : index
    %c0_22 = arith.constant 0 : index
    %c0_23 = arith.constant 0 : index
    %32 = vector.load %arg10[%c0_21, %c0_22, %c0_23] : memref<1x8x256xf32, #tpu.memory_space<vmem>>, vector<1x8x256xf32>
    %33 = vector.shape_cast %32 : vector<1x8x256xf32> to vector<8x256xf32>
    %34 = vector.shape_cast %31 : vector<8x256xf32> to vector<1x8x256xf32>
    tpu.vector_store %arg10[%c0_21, %c0_22, %c0_23], %34 {strides = array<i32>} : memref<1x8x256xf32, #tpu.memory_space<vmem>>, vector<1x8x256xf32>,
    return
  }
  func.func @transform_0(%arg0: i32, %arg1: i32) -> (i32, i32, i32) {
    %c0_i32 = arith.constant 0 : i32
    %c0_i32_0 = arith.constant 0 : i32
    return %arg0, %c0_i32, %arg1 : i32, i32, i32
  }
  func.func @transform_1(%arg0: i32, %arg1: i32) -> (i32, i32, i32) {
    %c0_i32 = arith.constant 0 : i32
    %c0_i32_0 = arith.constant 0 : i32
    return %arg0, %c0_i32, %arg1 : i32, i32, i32
  }
  func.func @transform_2(%arg0: i32, %arg1: i32) -> (i32, i32) {
    %c0_i32 = arith.constant 0 : i32
    %c0_i32_0 = arith.constant 0 : i32
    %c0_i32_1 = arith.constant 0 : i32
    return %c0_i32, %c0_i32_0 : i32, i32
  }
  func.func @transform_3(%arg0: i32, %arg1: i32) -> (i32, i32) {
    %c0_i32 = arith.constant 0 : i32
    %c0_i32_0 = arith.constant 0 : i32
    %c0_i32_1 = arith.constant 0 : i32
    return %c0_i32, %c0_i32_0 : i32, i32
  }
  func.func @transform_4(%arg0: i32, %arg1: i32) -> (i32, i32) {
    %c0_i32 = arith.constant 0 : i32
    %c0_i32_0 = arith.constant 0 : i32
    %c0_i32_1 = arith.constant 0 : i32
    return %c0_i32, %c0_i32_0 : i32, i32
  }
  func.func @transform_5(%arg0: i32, %arg1: i32) -> (i32, i32) {
    %c0_i32 = arith.constant 0 : i32
    %c0_i32_0 = arith.constant 0 : i32
    %c0_i32_1 = arith.constant 0 : i32
    return %c0_i32, %c0_i32_0 : i32, i32
  }
  func.func @transform_6(%arg0: i32, %arg1: i32) -> (i32, i32) {
    %c0_i32 = arith.constant 0 : i32
    %c0_i32_0 = arith.constant 0 : i32
    %c0_i32_1 = arith.constant 0 : i32
    return %c0_i32, %c0_i32_0 : i32, i32
  }
  func.func @transform_7(%arg0: i32, %arg1: i32) -> (i32, i32) {
    %c0_i32 = arith.constant 0 : i32
    %c0_i32_0 = arith.constant 0 : i32
    %c0_i32_1 = arith.constant 0 : i32
    return %c0_i32, %c0_i32_0 : i32, i32
  }
  func.func @transform_8(%arg0: i32, %arg1: i32) -> (i32, i32, i32) {
    %c0_i32 = arith.constant 0 : i32
    %c0_i32_0 = arith.constant 0 : i32
    return %arg0, %c0_i32, %arg1 : i32, i32, i32
  }
}

</mosaic_0001>

<llo_original>
// kernel: tpu_custom_call.1
$region0: #{tpu_custom_call.1}
  #allocation0 [shape = 'u32[]', space=smem, size = 0x4, offset = 0x4, fixed_abs, tag = 'smem constant byte address 0x4 - core index']
  #allocation1 [shape = 'u32[144,128]{1,0:T(1,128)}', space=vmem, size = 0x12000, scoped, tag = 'internal scratch']
  #allocation2 [shape = 'f32[1,1]{1,0:T(1,128)S(1)}', space=vmem, size = 0x200, scoped, tag = 'scoped memory for tpu_custom_call.1']
  %s0 = inlined_call_operand.vmem [shape: bf16[2,4,256], index: 0, kind: input, shape index: {}]
  %s1 = inlined_call_operand.vmem [shape: bf16[2,4,256], index: 1, kind: input, shape index: {}]
  %s2 = inlined_call_operand.vmem [shape: bf16[8,4], index: 2, kind: input, shape index: {}]
  %s3 = inlined_call_operand.vmem [shape: bf16[8,4], index: 3, kind: input, shape index: {}]
  %s4 = inlined_call_operand.vmem [shape: f32[8,1], index: 4, kind: input, shape index: {}]
  %s5 = inlined_call_operand.vmem [shape: f32[8,1], index: 5, kind: input, shape index: {}]
  %s6 = inlined_call_operand.vmem [shape: f32[8,1], index: 6, kind: input, shape index: {}]
  %s7 = inlined_call_operand.<no memory space> [shape: f32[1,1], index: 7, kind: input, shape index: {}]
  %s8 = inlined_call_operand.hbm [shape: f32[2,8,256], index: 8, kind: output, shape index: {}]
  %s9 = sld [smem:[#allocation0]]
  $region65: #{tpu_custom_call.1} parent=0
    _
  %s11 = ssub.s32 1, %s9
  %s12 = scalar_select 0, %s11, %s9
  %v13 = vstv %s7
  %14 = vst [vmem:[#allocation2] sm:$0x1] %v13
  $region1: #{tpu_custom_call.1} parent=0
    #allocation3 [shape = 'u8[16384]{0}', space=vmem, size = 0x4000, scoped, tag = 'output window, operand 0']
    #allocation4 [shape = 's32[2]{0}', space=sflag, size = 0x8, scoped, tag = 'scoped memory for tpu_custom_call.1']
    %15 = vsyncpa [#allocation4], 0
    %s16 = scalar_lea.sflag [#allocation4], 1
    %17 = vsyncpa %s16, 0
    loop: start=0, step=1, limit=4
    $region2: #{tpu_custom_call.1} parent=1 // loop_pre_header
      _
    $region3: #{tpu_custom_call.1} parent=1 // loop_header
      %s19 = sphi 0, %s23
      %p20 = scmp.ge.s32.totalorder %s19, 4
      %s26 = sphi 0, %s38
      %s27 = sphi 0, %s34
      %s28 = sphi 0, %s26
      %s29 = sphi 0, %s27
      %s30 = sphi 0, %s28
      %s31 = sphi 0, %s29
      %s43 = sphi 0, %s45
      %s46 = sphi 0, %s43
      %s47 = sphi 0, %s46
      %s63 = sphi 0, %s47
      %s71 = sphi 0, %s73
      %s74 = sphi 0, %s71
      %s75 = sphi 0, %s74
      %s91 = sphi 0, %s75
      %s95 = sphi 0, %s95
      %s97 = sphi 0, %s95
      %s98 = sphi 0, %s97
      %s112 = sphi 0, %s98
      %s116 = sphi 0, %s116
      %s118 = sphi 0, %s116
      %s119 = sphi 0, %s118
      %s133 = sphi 0, %s119
      %s137 = sphi 0, %s137
      %s139 = sphi 0, %s137
      %s140 = sphi 0, %s139
      %s154 = sphi 0, %s140
      %s158 = sphi 0, %s158
      %s160 = sphi 0, %s158
      %s161 = sphi 0, %s160
      %s175 = sphi 0, %s161
      %s179 = sphi 0, %s179
      %s181 = sphi 0, %s179
      %s182 = sphi 0, %s181
      %s196 = sphi 0, %s182
      %s200 = sphi 0, %s200
      %s202 = sphi 0, %s200
      %s203 = sphi 0, %s202
      %s217 = sphi 0, %s203
      %s225 = sphi 0, %s227
      %s228 = sphi 0, %s225
      %s229 = sphi 0, %s228
      %s245 = sphi 0, %s229
    $region4: #{tpu_custom_call.1} parent=1 // loop_header_branch
      %22 = sbr.rel (%p20) target = $region8
    $region5: #{tpu_custom_call.1} parent=1 // loop_body
      %s24 = ssub.s32 %s19, 1
      %s25 = ssub.s32 %s19, 2
      %s32 = sadd.s32 1, %s27
      %p33 = scmp.ge.s32.totalorder %s32, 1
      %s34 = scalar_select %p33, 0, %s32
      %s35 = sadd.s32 1, %s26
      %s36 = scalar_select %p33, %s35, %s26
      %p37 = scmp.ge.s32.totalorder %s36, 2
      %s38 = scalar_select %p37, 0, %s36
      %s39 = ssub.s32 %s26, %s38
      %s40 = ssub.s32 %s27, %s34
      %s41 = sor.u32 %s39, %s40
      %p42 = scmp.eq.s32.totalorder %s41, 0
      %s44 = sadd.s32 %s43, 1
      %s45 = scalar_select %p42, %s43, %s44
      %p48 = pneg %p42
      %p49 = scmp.eq.s32.totalorder %s19, 1
      %p50 = por %p48, %p49
      %p51 = scmp.ne.s32.totalorder %s43, %s46
      %p52 = scmp.eq.s32.totalorder %s19, 0
      %p53 = por %p51, %p52
      %p54 = scmp.ne.s32.totalorder %s43, %s46
      %p55 = scmp.eq.s32.totalorder %s24, 1
      %p56 = por %p54, %p55
      %p57 = scmp.ne.s32.totalorder %s46, %s47
      %p58 = scmp.eq.s32.totalorder %s24, 0
      %p59 = por %p57, %p58
      %p60 = scmp.ne.s32.totalorder %s46, %s47
      %p61 = scmp.eq.s32.totalorder %s25, 1
      %p62 = por %p60, %p61
      %p64 = scmp.ne.s32.totalorder %s47, %s63
      %p65 = scmp.eq.s32.totalorder %s25, 0
      %p66 = por %p64, %p65
      %s67 = ssub.s32 %s26, %s38
      %s68 = ssub.s32 %s27, %s34
      %s69 = sor.u32 %s67, %s68
      %p70 = scmp.eq.s32.totalorder %s69, 0
      %s72 = sadd.s32 %s71, 1
      %s73 = scalar_select %p70, %s71, %s72
      %p76 = pneg %p70
      %p77 = scmp.eq.s32.totalorder %s19, 1
      %p78 = por %p76, %p77
      %p79 = scmp.ne.s32.totalorder %s71, %s74
      %p80 = scmp.eq.s32.totalorder %s19, 0
      %p81 = por %p79, %p80
      %p82 = scmp.ne.s32.totalorder %s71, %s74
      %p83 = scmp.eq.s32.totalorder %s24, 1
      %p84 = por %p82, %p83
      %p85 = scmp.ne.s32.totalorder %s74, %s75
      %p86 = scmp.eq.s32.totalorder %s24, 0
      %p87 = por %p85, %p86
      %p88 = scmp.ne.s32.totalorder %s74, %s75
      %p89 = scmp.eq.s32.totalorder %s25, 1
      %p90 = por %p88, %p89
      %p92 = scmp.ne.s32.totalorder %s75, %s91
      %p93 = scmp.eq.s32.totalorder %s25, 0
      %p94 = por %p92, %p93
      %s96 = sadd.s32 %s95, 1
      %p99 = scmp.eq.s32.totalorder %s19, 1
      %p100 = scmp.ne.s32.totalorder %s95, %s97
      %p101 = scmp.eq.s32.totalorder %s19, 0
      %p102 = por %p100, %p101
      %p103 = scmp.ne.s32.totalorder %s95, %s97
      %p104 = scmp.eq.s32.totalorder %s24, 1
      %p105 = por %p103, %p104
      %p106 = scmp.ne.s32.totalorder %s97, %s98
      %p107 = scmp.eq.s32.totalorder %s24, 0
      %p108 = por %p106, %p107
      %p109 = scmp.ne.s32.totalorder %s97, %s98
      %p110 = scmp.eq.s32.totalorder %s25, 1
      %p111 = por %p109, %p110
      %p113 = scmp.ne.s32.totalorder %s98, %s112
      %p114 = scmp.eq.s32.totalorder %s25, 0
      %p115 = por %p113, %p114
      %s117 = sadd.s32 %s116, 1
      %p120 = scmp.eq.s32.totalorder %s19, 1
      %p121 = scmp.ne.s32.totalorder %s116, %s118
      %p122 = scmp.eq.s32.totalorder %s19, 0
      %p123 = por %p121, %p122
      %p124 = scmp.ne.s32.totalorder %s116, %s118
      %p125 = scmp.eq.s32.totalorder %s24, 1
      %p126 = por %p124, %p125
      %p127 = scmp.ne.s32.totalorder %s118, %s119
      %p128 = scmp.eq.s32.totalorder %s24, 0
      %p129 = por %p127, %p128
      %p130 = scmp.ne.s32.totalorder %s118, %s119
      %p131 = scmp.eq.s32.totalorder %s25, 1
      %p132 = por %p130, %p131
      %p134 = scmp.ne.s32.totalorder %s119, %s133
      %p135 = scmp.eq.s32.totalorder %s25, 0
      %p136 = por %p134, %p135
      %s138 = sadd.s32 %s137, 1
      %p141 = scmp.eq.s32.totalorder %s19, 1
      %p142 = scmp.ne.s32.totalorder %s137, %s139
      %p143 = scmp.eq.s32.totalorder %s19, 0
      %p144 = por %p142, %p143
      %p145 = scmp.ne.s32.totalorder %s137, %s139
      %p146 = scmp.eq.s32.totalorder %s24, 1
      %p147 = por %p145, %p146
      %p148 = scmp.ne.s32.totalorder %s139, %s140
      %p149 = scmp.eq.s32.totalorder %s24, 0
      %p150 = por %p148, %p149
      %p151 = scmp.ne.s32.totalorder %s139, %s140
      %p152 = scmp.eq.s32.totalorder %s25, 1
      %p153 = por %p151, %p152
      %p155 = scmp.ne.s32.totalorder %s140, %s154
      %p156 = scmp.eq.s32.totalorder %s25, 0
      %p157 = por %p155, %p156
      %s159 = sadd.s32 %s158, 1
      %p162 = scmp.eq.s32.totalorder %s19, 1
      %p163 = scmp.ne.s32.totalorder %s158, %s160
      %p164 = scmp.eq.s32.totalorder %s19, 0
      %p165 = por %p163, %p164
      %p166 = scmp.ne.s32.totalorder %s158, %s160
      %p167 = scmp.eq.s32.totalorder %s24, 1
      %p168 = por %p166, %p167
      %p169 = scmp.ne.s32.totalorder %s160, %s161
      %p170 = scmp.eq.s32.totalorder %s24, 0
      %p171 = por %p169, %p170
      %p172 = scmp.ne.s32.totalorder %s160, %s161
      %p173 = scmp.eq.s32.totalorder %s25, 1
      %p174 = por %p172, %p173
      %p176 = scmp.ne.s32.totalorder %s161, %s175
      %p177 = scmp.eq.s32.totalorder %s25, 0
      %p178 = por %p176, %p177
      %s180 = sadd.s32 %s179, 1
      %p183 = scmp.eq.s32.totalorder %s19, 1
      %p184 = scmp.ne.s32.totalorder %s179, %s181
      %p185 = scmp.eq.s32.totalorder %s19, 0
      %p186 = por %p184, %p185
      %p187 = scmp.ne.s32.totalorder %s179, %s181
      %p188 = scmp.eq.s32.totalorder %s24, 1
      %p189 = por %p187, %p188
      %p190 = scmp.ne.s32.totalorder %s181, %s182
      %p191 = scmp.eq.s32.totalorder %s24, 0
      %p192 = por %p190, %p191
      %p193 = scmp.ne.s32.totalorder %s181, %s182
      %p194 = scmp.eq.s32.totalorder %s25, 1
      %p195 = por %p193, %p194
      %p197 = scmp.ne.s32.totalorder %s182, %s196
      %p198 = scmp.eq.s32.totalorder %s25, 0
      %p199 = por %p197, %p198
      %s201 = sadd.s32 %s200, 1
      %p204 = scmp.eq.s32.totalorder %s19, 1
      %p205 = scmp.ne.s32.totalorder %s200, %s202
      %p206 = scmp.eq.s32.totalorder %s19, 0
      %p207 = por %p205, %p206
      %p208 = scmp.ne.s32.totalorder %s200, %s202
      %p209 = scmp.eq.s32.totalorder %s24, 1
      %p210 = por %p208, %p209
      %p211 = scmp.ne.s32.totalorder %s202, %s203
      %p212 = scmp.eq.s32.totalorder %s24, 0
      %p213 = por %p211, %p212
      %p214 = scmp.ne.s32.totalorder %s202, %s203
      %p215 = scmp.eq.s32.totalorder %s25, 1
      %p216 = por %p214, %p215
      %p218 = scmp.ne.s32.totalorder %s203, %s217
      %p219 = scmp.eq.s32.totalorder %s25, 0
      %p220 = por %p218, %p219
      %s221 = ssub.s32 %s26, %s38
      %s222 = ssub.s32 %s27, %s34
      %s223 = sor.u32 %s221, %s222
      %p224 = scmp.eq.s32.totalorder %s223, 0
      %s226 = sadd.s32 %s225, 1
      %s227 = scalar_select %p224, %s225, %s226
      %p230 = pneg %p224
      %p231 = scmp.eq.s32.totalorder %s19, 1
      %p232 = por %p230, %p231
      %p233 = scmp.ne.s32.totalorder %s225, %s228
      %p234 = scmp.eq.s32.totalorder %s19, 0
      %p235 = por %p233, %p234
      %p236 = scmp.ne.s32.totalorder %s225, %s228
      %p237 = scmp.eq.s32.totalorder %s24, 1
      %p238 = por %p236, %p237
      %p239 = scmp.ne.s32.totalorder %s228, %s229
      %p240 = scmp.eq.s32.totalorder %s24, 0
      %p241 = por %p239, %p240
      %p242 = scmp.ne.s32.totalorder %s228, %s229
      %p243 = scmp.eq.s32.totalorder %s25, 1
      %p244 = por %p242, %p243
      %p246 = scmp.ne.s32.totalorder %s229, %s245
      %p247 = scmp.eq.s32.totalorder %s25, 0
      %p248 = por %p246, %p247
      %p249 = scmp.le.s32.totalorder 1, %s19
      %p250 = scmp.lt.s32.totalorder %s19, 3
      %p251 = pnand %p249, %p250
      %p252 = pneg %p251
      // Predicated region
      $region9: #{tpu_custom_call.1} parent=5 // pred_check
        _
      $region10: #{tpu_custom_call.1} parent=5 // pred_check_branch
        %254 = sbr.rel (%p251) target = $region12
      $region11: #{tpu_custom_call.1} parent=5 // pred_region
        %s255 = ssub.s32 %s19, 1
        // Predicated region
        $region13: #{tpu_custom_call.1} parent=11 // pred_check
          %p256 = pneg %p108
        $region14: #{tpu_custom_call.1} parent=11 // pred_check_branch
          %258 = sbr.rel (%p256) target = $region16
        $region15: #{tpu_custom_call.1} parent=11 // pred_region
          _
        $region16: #{tpu_custom_call.1} parent=11 // pred_fallthru
          _
        // Predicated region
        $region17: #{tpu_custom_call.1} parent=11 // pred_check
          %p259 = pneg %p129
        $region18: #{tpu_custom_call.1} parent=11 // pred_check_branch
          %261 = sbr.rel (%p259) target = $region20
        $region19: #{tpu_custom_call.1} parent=11 // pred_region
          _
        $region20: #{tpu_custom_call.1} parent=11 // pred_fallthru
          _
        // Predicated region
        $region21: #{tpu_custom_call.1} parent=11 // pred_check
          %p262 = pneg %p150
        $region22: #{tpu_custom_call.1} parent=11 // pred_check_branch
          %264 = sbr.rel (%p262) target = $region24
        $region23: #{tpu_custom_call.1} parent=11 // pred_region
          _
        $region24: #{tpu_custom_call.1} parent=11 // pred_fallthru
          _
        // Predicated region
        $region25: #{tpu_custom_call.1} parent=11 // pred_check
          %p265 = pneg %p171
        $region26: #{tpu_custom_call.1} parent=11 // pred_check_branch
          %267 = sbr.rel (%p265) target = $region28
        $region27: #{tpu_custom_call.1} parent=11 // pred_region
          _
        $region28: #{tpu_custom_call.1} parent=11 // pred_fallthru
          _
        // Predicated region
        $region29: #{tpu_custom_call.1} parent=11 // pred_check
          %p268 = pneg %p192
        $region30: #{tpu_custom_call.1} parent=11 // pred_check_branch
          %270 = sbr.rel (%p268) target = $region32
        $region31: #{tpu_custom_call.1} parent=11 // pred_region
          _
        $region32: #{tpu_custom_call.1} parent=11 // pred_fallthru
          _
        // Predicated region
        $region33: #{tpu_custom_call.1} parent=11 // pred_check
          %p271 = pneg %p213
        $region34: #{tpu_custom_call.1} parent=11 // pred_check_branch
          %273 = sbr.rel (%p271) target = $region36
        $region35: #{tpu_custom_call.1} parent=11 // pred_region
          _
        $region36: #{tpu_custom_call.1} parent=11 // pred_fallthru
          _
      $region12: #{tpu_custom_call.1} parent=5 // pred_fallthru
        _
      %p274 = scmp.lt.s32.totalorder %s19, 2
      // Predicated region
      $region37: #{tpu_custom_call.1} parent=5 // pred_check
        %p275 = pneg %p274
      $region38: #{tpu_custom_call.1} parent=5 // pred_check_branch
        %277 = sbr.rel (%p275) target = $region40
      $region39: #{tpu_custom_call.1} parent=5 // pred_region
        // Predicated region
        $region41: #{tpu_custom_call.1} parent=39 // pred_check
          %p278 = pneg %p53
        $region42: #{tpu_custom_call.1} parent=39 // pred_check_branch
          %280 = sbr.rel (%p278) target = $region44
        $region43: #{tpu_custom_call.1} parent=39 // pred_region
          %s281 = smul.u32 2, %s27
          %p282 = scmp.lt.s32.totalorder %s26, 1
          %s283 = scalar_select %p282, %s26, 1
          %p284 = scmp.lt.s32.totalorder %s281, 1
          %s285 = scalar_select %p284, %s281, 1
          %s286 = smul.addr %s283, 2
          %s287 = sadd.s32 %s285, %s286
          %s288 = smul.addr %s287, 2
          %s289 = scalar_lea.vmem %s0, %s288
          %s290 = smul.u32 2, %s27
        $region44: #{tpu_custom_call.1} parent=39 // pred_fallthru
          _
        // Predicated region
        $region45: #{tpu_custom_call.1} parent=39 // pred_check
          %p291 = pneg %p81
        $region46: #{tpu_custom_call.1} parent=39 // pred_check_branch
          %293 = sbr.rel (%p291) target = $region48
        $region47: #{tpu_custom_call.1} parent=39 // pred_region
          %s294 = smul.u32 2, %s27
          %p295 = scmp.lt.s32.totalorder %s26, 1
          %s296 = scalar_select %p295, %s26, 1
          %p297 = scmp.lt.s32.totalorder %s294, 1
          %s298 = scalar_select %p297, %s294, 1
          %s299 = smul.addr %s296, 2
          %s300 = sadd.s32 %s298, %s299
          %s301 = smul.addr %s300, 2
          %s302 = scalar_lea.vmem %s1, %s301
          %s303 = smul.u32 2, %s27
        $region48: #{tpu_custom_call.1} parent=39 // pred_fallthru
          _
      $region40: #{tpu_custom_call.1} parent=5 // pred_fallthru
        _
      %p304 = scmp.le.s32.totalorder 1, %s19
      %p305 = scmp.lt.s32.totalorder %s19, 3
      %p306 = pnand %p304, %p305
      %p307 = pneg %p306
      // Predicated region
      $region49: #{tpu_custom_call.1} parent=5 // pred_check
        _
      $region50: #{tpu_custom_call.1} parent=5 // pred_check_branch
        %309 = sbr.rel (%p306) target = $region52
      $region51: #{tpu_custom_call.1} parent=5 // pred_region
        %s310 = ssub.s32 %s19, 1
        %s311 = smul.u32 2, %s29
        %p312 = scmp.lt.s32.totalorder %s28, 1
        %s313 = scalar_select %p312, %s28, 1
        %p314 = scmp.lt.s32.totalorder %s311, 1
        %s315 = scalar_select %p314, %s311, 1
        %s316 = smul.addr %s313, 2
        %s317 = sadd.s32 %s315, %s316
        %s318 = smul.addr %s317, 2
        %s319 = scalar_lea.vmem %s0, %s318
        %p320 = pneg %p59
        %p321 = pneg %p56
        %s322 = smul.u32 2, %s29
        %p323 = scmp.lt.s32.totalorder %s28, 1
        %s324 = scalar_select %p323, %s28, 1
        %p325 = scmp.lt.s32.totalorder %s322, 1
        %s326 = scalar_select %p325, %s322, 1
        %s327 = smul.addr %s324, 2
        %s328 = sadd.s32 %s326, %s327
        %s329 = smul.addr %s328, 2
        %s330 = scalar_lea.vmem %s1, %s329
        %p331 = pneg %p87
        %p332 = pneg %p84
        %p333 = pneg %p108
        %p334 = pneg %p105
        %p335 = pneg %p129
        %p336 = pneg %p126
        %p337 = pneg %p150
        %p338 = pneg %p147
        %p339 = pneg %p171
        %p340 = pneg %p168
        %p341 = pneg %p192
        %p342 = pneg %p189
        %p343 = pneg %p213
        %p344 = pneg %p210
        %p345 = pneg %p241
        %p346 = pneg %p238
        %s347 = sand.u32 %s228, 1
        %s348 = scalar_lea.sflag [#allocation4], %s347
        %s349 = sand.u32 %s228, 1
        %s350 = smul.addr %s349, 16
        %s351 = scalar_lea.vmem [#allocation3], %s350
        %s352 = smul.u32 2, %s29
        %p353 = scmp.lt.s32.totalorder %s28, 1
        %s354 = scalar_select %p353, %s28, 1
        %p355 = scmp.lt.s32.totalorder %s352, 1
        %s356 = scalar_select %p355, %s352, 1
        %s357 = smul.addr %s354, 2
        %s358 = sadd.s32 %s356, %s357
        %s359 = smul.addr %s358, 2
        %s360 = scalar_lea.vmem %s0, %s359
        %s361 = smul.u32 2, %s29
        %s362 = smul.u32 2, %s29
        %p363 = scmp.lt.s32.totalorder %s28, 1
        %s364 = scalar_select %p363, %s28, 1
        %p365 = scmp.lt.s32.totalorder %s362, 1
        %s366 = scalar_select %p365, %s362, 1
        %s367 = smul.addr %s364, 2
        %s368 = sadd.s32 %s366, %s367
        %s369 = smul.addr %s368, 2
        %s370 = scalar_lea.vmem %s1, %s369
        %s371 = smul.u32 2, %s29
        %s372 = smul.u32 2, %s29
        %v374 = vld [vmem:[%s360] sm:$0xf]
        %v375 = vld [vmem:[%s370] sm:$0xf]
        %v376 = vld [vmem:[%s3] sm:$0xf]
        %v377 = vld [vmem:[%s6] sm:$0xff]
        %379 = vset.pattern.permute.xlu0 0
        %380 = vperm.xlu0 %379, %v377
        %v381 = vpop.permute.xlu0 %380
        %v385 = vunpack.c.l.s4 1983009808
        %v386 = vunpack.c.0.s8 %v385
        %v387 = vlaneseq
        %v388 = vshrl.u32 %v387, 7
        %v389 = vsub.s32 %v386, %v388
        %v390 = vrot.slane %v375, %v389
        %v391 = vcombine.high %v390, %v390
        %vm392 = vcmask 31744
        %v394 = vsel %vm392, %v376, 0
        %vm396 = vcmask 1041408
        %v398 = vsel %vm396, %v390, 0
        %v401 = vsel %vm396, %v391, 0
        %403 = vmatprep.subr.bf16.mxu0 %v401
        %404 = vmatpush1.bf16.msra.mxu0 %v398
        %405 = vmatprep.subr.bf16.mxu0 0
        %406 = vmatpush1.bf16.msra.mxu0 0
        %407 = vmatprep.subr.bf16.mxu0 0
        %408 = vmatpush1.bf16.msra.mxu0 0
        %409 = vmatprep.subr.bf16.mxu0 0
        %410 = vmatpush1.bf16.msra.mxu0 0
        %411 = vmatprep.subr.bf16.mxu0 0
        %412 = vmatpush1.bf16.msra.mxu0 0
        %413 = vmatprep.subr.bf16.mxu0 0
        %414 = vmatpush1.bf16.msra.mxu0 0
        %415 = vmatprep.subr.bf16.mxu0 0
        %416 = vmatpush1.bf16.msra.mxu0 0
        %417 = vmatprep.subr.bf16.mxu0 0
        %418 = vmatpush1.bf16.msra.mxu0 0
        %419 = vmatprep.subr.bf16.mxu0 0
        %420 = vmatpush1.bf16.msra.mxu0 0
        %421 = vmatprep.subr.bf16.mxu0 0
        %422 = vmatpush1.bf16.msra.mxu0 0
        %423 = vmatprep.subr.bf16.mxu0 0
        %424 = vmatpush1.bf16.msra.mxu0 0
        %425 = vmatprep.subr.bf16.mxu0 0
        %426 = vmatpush1.bf16.msra.mxu0 0
        %427 = vmatprep.subr.bf16.mxu0 0
        %428 = vmatpush1.bf16.msra.mxu0 0
        %429 = vmatprep.subr.bf16.mxu0 0
        %430 = vmatpush1.bf16.msra.mxu0 0
        %431 = vmatprep.subr.bf16.mxu0 0
        %432 = vmatpush1.bf16.msra.mxu0 0
        %433 = vmatprep.subr.bf16.mxu0 0
        %434 = vmatpush1.bf16.msra.mxu0 0
        %435 = vmatprep.mubr.bf16.mxu0 0
        %436 = vmatmul.mubr.bf16.gmra.mrb[0].mxu0 %v394
        %v437 = vpop.f32.mrb[0].mxu0
        %v438 = vadd.f32 %v381, %v437
        %v439 = vpop.f32.mrb[0].mxu0
        %v440 = vadd.f32 %v381, %v439
        %v441 = vpop.f32.mrb[0].mxu0
        %v442 = vpop.f32.mrb[0].mxu0
        %443 = vdwg.mxu0
        %v444 = vld [vmem:[%s2] sm:$0xf]
        %v447 = vunpack.c.l.s4 1983009808
        %v448 = vunpack.c.0.s8 %v447
        %v449 = vlaneseq
        %v450 = vshrl.u32 %v449, 7
        %v451 = vsub.s32 %v448, %v450
        %v452 = vrot.slane %v374, %v451
        %v453 = vcombine.high %v452, %v452
        %v455 = vsel %vm392, %v444, 0
        %v458 = vsel %vm396, %v452, 0
        %v461 = vsel %vm396, %v453, 0
        %463 = vmatprep.subr.bf16.mxu0 %v461
        %464 = vmatpush1.bf16.msra.mxu0 %v458
        %465 = vmatprep.subr.bf16.mxu0 0
        %466 = vmatpush1.bf16.msra.mxu0 0
        %467 = vmatprep.subr.bf16.mxu0 0
        %468 = vmatpush1.bf16.msra.mxu0 0
        %469 = vmatprep.subr.bf16.mxu0 0
        %470 = vmatpush1.bf16.msra.mxu0 0
        %471 = vmatprep.subr.bf16.mxu0 0
        %472 = vmatpush1.bf16.msra.mxu0 0
        %473 = vmatprep.subr.bf16.mxu0 0
        %474 = vmatpush1.bf16.msra.mxu0 0
        %475 = vmatprep.subr.bf16.mxu0 0
        %476 = vmatpush1.bf16.msra.mxu0 0
        %477 = vmatprep.subr.bf16.mxu0 0
        %478 = vmatpush1.bf16.msra.mxu0 0
        %479 = vmatprep.subr.bf16.mxu0 0
        %480 = vmatpush1.bf16.msra.mxu0 0
        %481 = vmatprep.subr.bf16.mxu0 0
        %482 = vmatpush1.bf16.msra.mxu0 0
        %483 = vmatprep.subr.bf16.mxu0 0
        %484 = vmatpush1.bf16.msra.mxu0 0
        %485 = vmatprep.subr.bf16.mxu0 0
        %486 = vmatpush1.bf16.msra.mxu0 0
        %487 = vmatprep.subr.bf16.mxu0 0
        %488 = vmatpush1.bf16.msra.mxu0 0
        %489 = vmatprep.subr.bf16.mxu0 0
        %490 = vmatpush1.bf16.msra.mxu0 0
        %491 = vmatprep.subr.bf16.mxu0 0
        %492 = vmatpush1.bf16.msra.mxu0 0
        %493 = vmatprep.subr.bf16.mxu0 0
        %494 = vmatpush1.bf16.msra.mxu0 0
        %495 = vmatprep.mubr.bf16.mxu0 0
        %496 = vmatmul.mubr.bf16.gmra.mrb[0].mxu0 %v455
        %v497 = vpop.f32.mrb[0].mxu0
        %v498 = vadd.f32 %v438, %v497
        %v499 = vpop.f32.mrb[0].mxu0
        %v500 = vadd.f32 %v440, %v499
        %v501 = vpop.f32.mrb[0].mxu0
        %v502 = vpop.f32.mrb[0].mxu0
        %503 = vdwg.mxu0
        %v504 = vld [vmem:[%s5] sm:$0xff]
        %506 = vset.pattern.permute.xlu0 0
        %507 = vperm.xlu0 %506, %v504
        %v508 = vpop.permute.xlu0 %507
        %v510 = vadd.f32 %v498, %v508
        %v511 = vadd.f32 %v500, %v508
        %v512 = vmax.f32 %v510, 0.0
        %v513 = vmax.f32 %v511, 0.0
        %v514 = vld [vmem:[%s4] sm:$0xff]
        %516 = vset.pattern.permute.xlu0 0
        %517 = vperm.xlu0 %516, %v514
        %v518 = vpop.permute.xlu0 %517
        %v520 = vmul.f32 %v512, %v518
        %v521 = vmul.f32 %v513, %v518
        %v522 = vrot.slane %v520, 4
        %v523 = vadd.f32 %v520, %v522
        %v524 = vrot.slane %v523, 2
        %v525 = vadd.f32 %v523, %v524
        %v526 = vrot.slane %v525, 1
        %v527 = vadd.f32 %v525, %v526
        %v528 = vrot.slane %v521, 4
        %v529 = vadd.f32 %v521, %v528
        %v530 = vrot.slane %v529, 2
        %v531 = vadd.f32 %v529, %v530
        %v532 = vrot.slane %v531, 1
        %v533 = vadd.f32 %v531, %v532
        %v534 = vld [vmem:[#allocation2] sm:$0x1]
        %536 = vset.pattern.permute.xlu0 0
        %537 = vperm.xlu0 %536, %v534
        %v538 = vpop.permute.xlu0 %537
        %v540 = vlaneseq
        %v541 = vshrl.u32 %v540, 7
        %v542 = vsub.s32 0, %v541
        %v543 = vrot.slane %v538, %v542
        %v544 = vadd.f32 %v527, %v543
        %v545 = vadd.f32 %v533, %v543
        %v546 = vxor.u32 %v544, 2147483648
        %v547 = vxor.u32 %v545, 2147483648
        %v548 = vmul.f32 %v546, 1.442695
        %v549 = vpow.pop %v548
        %v550 = vmul.f32 %v547, 1.442695
        %v551 = vpow.pop %v550
        %v552 = vadd.f32 %v549, 1.0
        %v553 = vadd.f32 %v551, 1.0
        %v554 = vrcp.pop %v552
        %v555 = vmul.f32 1.0, %v554
        %v556 = vrcp.pop %v553
        %v557 = vmul.f32 1.0, %v556
        %v558 = vmul.f32 %v438, %v555
        %v559 = vmul.f32 %v440, %v557
        %560 = vst [vmem:[%s351] sm:$0xff] %v558
        %561 = vst [vmem:[%s351 + $0x8] sm:$0xff] %v559
        %s562 = sand.u32 %s228, 1
        %s563 = scalar_lea.sflag [#allocation4], %s562
        %s564 = sand.u32 %s228, 1
        %s565 = smul.addr %s564, 16
        %s566 = scalar_lea.vmem [#allocation3], %s565
        // Predicated region
        $region53: #{tpu_custom_call.1} parent=51 // pred_check
          %p567 = pneg %p238
        $region54: #{tpu_custom_call.1} parent=51 // pred_check_branch
          %569 = sbr.rel (%p567) target = $region56
        $region55: #{tpu_custom_call.1} parent=51 // pred_region
          %s570 = smul.u32 2, %s29
          %s572 = ssub.s32 256, 256
          %573 = vsyncadd %s563, %s572
          %s574 = smul.addr %s28, 2
          %s575 = sadd.s32 %s570, %s574
          %s576 = smul.addr %s575, 128
          %s577 = scalar_lea.hbm %s8, %s576
          %s579 = sshll.u32 %s566, 4
          %s580 = int_to_ptr.vmem [resolvable:$true] %s579
          %582 = dma.vmem_to_hbm [thread:$0]  %s580, 256, %s577, %s563
        $region56: #{tpu_custom_call.1} parent=51 // pred_fallthru
          _
      $region52: #{tpu_custom_call.1} parent=5 // pred_fallthru
        _
      %p583 = scmp.le.s32.totalorder 2, %s19
      // Predicated region
      $region57: #{tpu_custom_call.1} parent=5 // pred_check
        %p584 = pneg %p583
      $region58: #{tpu_custom_call.1} parent=5 // pred_check_branch
        %586 = sbr.rel (%p584) target = $region60
      $region59: #{tpu_custom_call.1} parent=5 // pred_region
        %s587 = ssub.s32 %s19, 2
        // Predicated region
        $region61: #{tpu_custom_call.1} parent=59 // pred_check
          %p588 = pneg %p244
        $region62: #{tpu_custom_call.1} parent=59 // pred_check_branch
          %590 = sbr.rel (%p588) target = $region64
        $region63: #{tpu_custom_call.1} parent=59 // pred_region
          %s591 = sand.u32 %s229, 1
          %s592 = scalar_lea.sflag [#allocation4], %s591
          %s593 = sand.u32 %s229, 1
          %s594 = smul.addr %s593, 16
          %s595 = scalar_lea.vmem [#allocation3], %s594
          %596 = dma.done %s592, 256
        $region64: #{tpu_custom_call.1} parent=59 // pred_fallthru
          _
      $region60: #{tpu_custom_call.1} parent=5 // pred_fallthru
        _
    $region6: #{tpu_custom_call.1} parent=1 // loop_footer
      %s23 = sadd.s32 1, %s19
    $region7: #{tpu_custom_call.1} parent=1 // loop_footer_branch
      %18 = sbr.rel target = $region3
    $region8: #{tpu_custom_call.1} parent=1 // loop_exit
      _
    %597 = vsyncpa [#allocation4], 1
    %s598 = scalar_lea.sflag [#allocation4], 1
    %599 = vsyncpa %s598, 1

// kernel: tpu_custom_call.1
$region0: #{tpu_custom_call.1}
  #allocation0 [shape = 'u32[]', space=smem, size = 0x4, offset = 0x4, fixed_abs, tag = 'smem constant byte address 0x4 - core index']
  #allocation1 [shape = 'u32[144,128]{1,0:T(1,128)}', space=vmem, size = 0x12000, scoped, tag = 'internal scratch']
  #allocation2 [shape = 'f32[1,1]{1,0:T(1,128)S(1)}', space=vmem, size = 0x200, scoped, tag = 'scoped memory for tpu_custom_call.1']
  %s0 = inlined_call_operand.vmem [shape: bf16[2,4,256], index: 0, kind: input, shape index: {}]
  %s1 = inlined_call_operand.vmem [shape: bf16[2,4,256], index: 1, kind: input, shape index: {}]
  %s2 = inlined_call_operand.vmem [shape: bf16[8,4], index: 2, kind: input, shape index: {}]
  %s3 = inlined_call_operand.vmem [shape: bf16[8,4], index: 3, kind: input, shape index: {}]
  %s4 = inlined_call_operand.vmem [shape: f32[8,1], index: 4, kind: input, shape index: {}]
  %s5 = inlined_call_operand.vmem [shape: f32[8,1], index: 5, kind: input, shape index: {}]
  %s6 = inlined_call_operand.vmem [shape: f32[8,1], index: 6, kind: input, shape index: {}]
  %s7 = inlined_call_operand.<no memory space> [shape: f32[1,1], index: 7, kind: input, shape index: {}]
  %s8 = inlined_call_operand.hbm [shape: f32[2,8,256], index: 8, kind: output, shape index: {}]
  %s9 = sld [smem:[#allocation0]]
  $region65: #{tpu_custom_call.1} parent=0
    _
  %s11 = ssub.s32 1, %s9
  %s12 = scalar_select 0, %s11, %s9
  %v13 = vstv %s7
  %14 = vst [vmem:[#allocation2] sm:$0x1] %v13
  $region1: #{tpu_custom_call.1} parent=0
    #allocation3 [shape = 'u8[16384]{0}', space=vmem, size = 0x4000, scoped, tag = 'output window, operand 0']
    #allocation4 [shape = 's32[2]{0}', space=sflag, size = 0x8, scoped, tag = 'scoped memory for tpu_custom_call.1']
    %15 = vsyncpa [#allocation4], 0
    %s16 = scalar_lea.sflag [#allocation4], 1
    %17 = vsyncpa %s16, 0
    loop: start=0, step=1, limit=4
    $region2: #{tpu_custom_call.1} parent=1 // loop_pre_header
      _
    $region3: #{tpu_custom_call.1} parent=1 // loop_header
      %s19 = sphi 0, %s23
      %p20 = scmp.ge.s32.totalorder %s19, 4
      %s26 = sphi 0, %s38
      %s27 = sphi 0, %s34
      %s28 = sphi 0, %s26
      %s29 = sphi 0, %s27
      %s30 = sphi 0, %s28
      %s31 = sphi 0, %s29
      %s43 = sphi 0, %s45
      %s46 = sphi 0, %s43
      %s47 = sphi 0, %s46
      %s63 = sphi 0, %s47
      %s71 = sphi 0, %s73
      %s74 = sphi 0, %s71
      %s75 = sphi 0, %s74
      %s91 = sphi 0, %s75
      %s95 = sphi 0, %s95
      %s97 = sphi 0, %s95
      %s98 = sphi 0, %s97
      %s112 = sphi 0, %s98
      %s116 = sphi 0, %s116
      %s118 = sphi 0, %s116
      %s119 = sphi 0, %s118
      %s133 = sphi 0, %s119
      %s137 = sphi 0, %s137
      %s139 = sphi 0, %s137
      %s140 = sphi 0, %s139
      %s154 = sphi 0, %s140
      %s158 = sphi 0, %s158
      %s160 = sphi 0, %s158
      %s161 = sphi 0, %s160
      %s175 = sphi 0, %s161
      %s179 = sphi 0, %s179
      %s181 = sphi 0, %s179
      %s182 = sphi 0, %s181
      %s196 = sphi 0, %s182
      %s200 = sphi 0, %s200
      %s202 = sphi 0, %s200
      %s203 = sphi 0, %s202
      %s217 = sphi 0, %s203
      %s225 = sphi 0, %s227
      %s228 = sphi 0, %s225
      %s229 = sphi 0, %s228
      %s245 = sphi 0, %s229
    $region4: #{tpu_custom_call.1} parent=1 // loop_header_branch
      %22 = sbr.rel (%p20) target = $region8
    $region5: #{tpu_custom_call.1} parent=1 // loop_body
      %s24 = ssub.s32 %s19, 1
      %s25 = ssub.s32 %s19, 2
      %s32 = sadd.s32 1, %s27
      %p33 = scmp.ge.s32.totalorder %s32, 1
      %s34 = scalar_select %p33, 0, %s32
      %s35 = sadd.s32 1, %s26
      %s36 = scalar_select %p33, %s35, %s26
      %p37 = scmp.ge.s32.totalorder %s36, 2
      %s38 = scalar_select %p37, 0, %s36
      %s39 = ssub.s32 %s26, %s38
      %s40 = ssub.s32 %s27, %s34
      %s41 = sor.u32 %s39, %s40
      %p42 = scmp.eq.s32.totalorder %s41, 0
      %s44 = sadd.s32 %s43, 1
      %s45 = scalar_select %p42, %s43, %s44
      %p48 = pneg %p42
      %p49 = scmp.eq.s32.totalorder %s19, 1
      %p50 = por %p48, %p49
      %p51 = scmp.ne.s32.totalorder %s43, %s46
      %p52 = scmp.eq.s32.totalorder %s19, 0
      %p53 = por %p51, %p52
      %p54 = scmp.ne.s32.totalorder %s43, %s46
      %p55 = scmp.eq.s32.totalorder %s24, 1
      %p56 = por %p54, %p55
      %p57 = scmp.ne.s32.totalorder %s46, %s47
      %p58 = scmp.eq.s32.totalorder %s24, 0
      %p59 = por %p57, %p58
      %p60 = scmp.ne.s32.totalorder %s46, %s47
      %p61 = scmp.eq.s32.totalorder %s25, 1
      %p62 = por %p60, %p61
      %p64 = scmp.ne.s32.totalorder %s47, %s63
      %p65 = scmp.eq.s32.totalorder %s25, 0
      %p66 = por %p64, %p65
      %s67 = ssub.s32 %s26, %s38
      %s68 = ssub.s32 %s27, %s34
      %s69 = sor.u32 %s67, %s68
      %p70 = scmp.eq.s32.totalorder %s69, 0
      %s72 = sadd.s32 %s71, 1
      %s73 = scalar_select %p70, %s71, %s72
      %p76 = pneg %p70
      %p77 = scmp.eq.s32.totalorder %s19, 1
      %p78 = por %p76, %p77
      %p79 = scmp.ne.s32.totalorder %s71, %s74
      %p80 = scmp.eq.s32.totalorder %s19, 0
      %p81 = por %p79, %p80
      %p82 = scmp.ne.s32.totalorder %s71, %s74
      %p83 = scmp.eq.s32.totalorder %s24, 1
      %p84 = por %p82, %p83
      %p85 = scmp.ne.s32.totalorder %s74, %s75
      %p86 = scmp.eq.s32.totalorder %s24, 0
      %p87 = por %p85, %p86
      %p88 = scmp.ne.s32.totalorder %s74, %s75
      %p89 = scmp.eq.s32.totalorder %s25, 1
      %p90 = por %p88, %p89
      %p92 = scmp.ne.s32.totalorder %s75, %s91
      %p93 = scmp.eq.s32.totalorder %s25, 0
      %p94 = por %p92, %p93
      %s96 = sadd.s32 %s95, 1
      %p99 = scmp.eq.s32.totalorder %s19, 1
      %p100 = scmp.ne.s32.totalorder %s95, %s97
      %p101 = scmp.eq.s32.totalorder %s19, 0
      %p102 = por %p100, %p101
      %p103 = scmp.ne.s32.totalorder %s95, %s97
      %p104 = scmp.eq.s32.totalorder %s24, 1
      %p105 = por %p103, %p104
      %p106 = scmp.ne.s32.totalorder %s97, %s98
      %p107 = scmp.eq.s32.totalorder %s24, 0
      %p108 = por %p106, %p107
      %p109 = scmp.ne.s32.totalorder %s97, %s98
      %p110 = scmp.eq.s32.totalorder %s25, 1
      %p111 = por %p109, %p110
      %p113 = scmp.ne.s32.totalorder %s98, %s112
      %p114 = scmp.eq.s32.totalorder %s25, 0
      %p115 = por %p113, %p114
      %s117 = sadd.s32 %s116, 1
      %p120 = scmp.eq.s32.totalorder %s19, 1
      %p121 = scmp.ne.s32.totalorder %s116, %s118
      %p122 = scmp.eq.s32.totalorder %s19, 0
      %p123 = por %p121, %p122
      %p124 = scmp.ne.s32.totalorder %s116, %s118
      %p125 = scmp.eq.s32.totalorder %s24, 1
      %p126 = por %p124, %p125
      %p127 = scmp.ne.s32.totalorder %s118, %s119
      %p128 = scmp.eq.s32.totalorder %s24, 0
      %p129 = por %p127, %p128
      %p130 = scmp.ne.s32.totalorder %s118, %s119
      %p131 = scmp.eq.s32.totalorder %s25, 1
      %p132 = por %p130, %p131
      %p134 = scmp.ne.s32.totalorder %s119, %s133
      %p135 = scmp.eq.s32.totalorder %s25, 0
      %p136 = por %p134, %p135
      %s138 = sadd.s32 %s137, 1
      %p141 = scmp.eq.s32.totalorder %s19, 1
      %p142 = scmp.ne.s32.totalorder %s137, %s139
      %p143 = scmp.eq.s32.totalorder %s19, 0
      %p144 = por %p142, %p143
      %p145 = scmp.ne.s32.totalorder %s137, %s139
      %p146 = scmp.eq.s32.totalorder %s24, 1
      %p147 = por %p145, %p146
      %p148 = scmp.ne.s32.totalorder %s139, %s140
      %p149 = scmp.eq.s32.totalorder %s24, 0
      %p150 = por %p148, %p149
      %p151 = scmp.ne.s32.totalorder %s139, %s140
      %p152 = scmp.eq.s32.totalorder %s25, 1
      %p153 = por %p151, %p152
      %p155 = scmp.ne.s32.totalorder %s140, %s154
      %p156 = scmp.eq.s32.totalorder %s25, 0
      %p157 = por %p155, %p156
      %s159 = sadd.s32 %s158, 1
      %p162 = scmp.eq.s32.totalorder %s19, 1
      %p163 = scmp.ne.s32.totalorder %s158, %s160
      %p164 = scmp.eq.s32.totalorder %s19, 0
      %p165 = por %p163, %p164
      %p166 = scmp.ne.s32.totalorder %s158, %s160
      %p167 = scmp.eq.s32.totalorder %s24, 1
      %p168 = por %p166, %p167
      %p169 = scmp.ne.s32.totalorder %s160, %s161
      %p170 = scmp.eq.s32.totalorder %s24, 0
      %p171 = por %p169, %p170
      %p172 = scmp.ne.s32.totalorder %s160, %s161
      %p173 = scmp.eq.s32.totalorder %s25, 1
      %p174 = por %p172, %p173
      %p176 = scmp.ne.s32.totalorder %s161, %s175
      %p177 = scmp.eq.s32.totalorder %s25, 0
      %p178 = por %p176, %p177
      %s180 = sadd.s32 %s179, 1
      %p183 = scmp.eq.s32.totalorder %s19, 1
      %p184 = scmp.ne.s32.totalorder %s179, %s181
      %p185 = scmp.eq.s32.totalorder %s19, 0
      %p186 = por %p184, %p185
      %p187 = scmp.ne.s32.totalorder %s179, %s181
      %p188 = scmp.eq.s32.totalorder %s24, 1
      %p189 = por %p187, %p188
      %p190 = scmp.ne.s32.totalorder %s181, %s182
      %p191 = scmp.eq.s32.totalorder %s24, 0
      %p192 = por %p190, %p191
      %p193 = scmp.ne.s32.totalorder %s181, %s182
      %p194 = scmp.eq.s32.totalorder %s25, 1
      %p195 = por %p193, %p194
      %p197 = scmp.ne.s32.totalorder %s182, %s196
      %p198 = scmp.eq.s32.totalorder %s25, 0
      %p199 = por %p197, %p198
      %s201 = sadd.s32 %s200, 1
      %p204 = scmp.eq.s32.totalorder %s19, 1
      %p205 = scmp.ne.s32.totalorder %s200, %s202
      %p206 = scmp.eq.s32.totalorder %s19, 0
      %p207 = por %p205, %p206
      %p208 = scmp.ne.s32.totalorder %s200, %s202
      %p209 = scmp.eq.s32.totalorder %s24, 1
      %p210 = por %p208, %p209
      %p211 = scmp.ne.s32.totalorder %s202, %s203
      %p212 = scmp.eq.s32.totalorder %s24, 0
      %p213 = por %p211, %p212
      %p214 = scmp.ne.s32.totalorder %s202, %s203
      %p215 = scmp.eq.s32.totalorder %s25, 1
      %p216 = por %p214, %p215
      %p218 = scmp.ne.s32.totalorder %s203, %s217
      %p219 = scmp.eq.s32.totalorder %s25, 0
      %p220 = por %p218, %p219
      %s221 = ssub.s32 %s26, %s38
      %s222 = ssub.s32 %s27, %s34
      %s223 = sor.u32 %s221, %s222
      %p224 = scmp.eq.s32.totalorder %s223, 0
      %s226 = sadd.s32 %s225, 1
      %s227 = scalar_select %p224, %s225, %s226
      %p230 = pneg %p224
      %p231 = scmp.eq.s32.totalorder %s19, 1
      %p232 = por %p230, %p231
      %p233 = scmp.ne.s32.totalorder %s225, %s228
      %p234 = scmp.eq.s32.totalorder %s19, 0
      %p235 = por %p233, %p234
      %p236 = scmp.ne.s32.totalorder %s225, %s228
      %p237 = scmp.eq.s32.totalorder %s24, 1
      %p238 = por %p236, %p237
      %p239 = scmp.ne.s32.totalorder %s228, %s229
      %p240 = scmp.eq.s32.totalorder %s24, 0
      %p241 = por %p239, %p240
      %p242 = scmp.ne.s32.totalorder %s228, %s229
      %p243 = scmp.eq.s32.totalorder %s25, 1
      %p244 = por %p242, %p243
      %p246 = scmp.ne.s32.totalorder %s229, %s245
      %p247 = scmp.eq.s32.totalorder %s25, 0
      %p248 = por %p246, %p247
      %p249 = scmp.le.s32.totalorder 1, %s19
      %p250 = scmp.lt.s32.totalorder %s19, 3
      %p251 = pnand %p249, %p250
      %p252 = pneg %p251
      // Predicated region
      $region9: #{tpu_custom_call.1} parent=5 // pred_check
        _
      $region10: #{tpu_custom_call.1} parent=5 // pred_check_branch
        %254 = sbr.rel (%p251) target = $region12
      $region11: #{tpu_custom_call.1} parent=5 // pred_region
        %s255 = ssub.s32 %s19, 1
        // Predicated region
        $region13: #{tpu_custom_call.1} parent=11 // pred_check
          %p256 = pneg %p108
        $region14: #{tpu_custom_call.1} parent=11 // pred_check_branch
          %258 = sbr.rel (%p256) target = $region16
        $region15: #{tpu_custom_call.1} parent=11 // pred_region
          _
        $region16: #{tpu_custom_call.1} parent=11 // pred_fallthru
          _
        // Predicated region
        $region17: #{tpu_custom_call.1} parent=11 // pred_check
          %p259 = pneg %p129
        $region18: #{tpu_custom_call.1} parent=11 // pred_check_branch
          %261 = sbr.rel (%p259) target = $region20
        $region19: #{tpu_custom_call.1} parent=11 // pred_region
          _
        $region20: #{tpu_custom_call.1} parent=11 // pred_fallthru
          _
        // Predicated region
        $region21: #{tpu_custom_call.1} parent=11 // pred_check
          %p262 = pneg %p150
        $region22: #{tpu_custom_call.1} parent=11 // pred_check_branch
          %264 = sbr.rel (%p262) target = $region24
        $region23: #{tpu_custom_call.1} parent=11 // pred_region
          _
        $region24: #{tpu_custom_call.1} parent=11 // pred_fallthru
          _
        // Predicated region
        $region25: #{tpu_custom_call.1} parent=11 // pred_check
          %p265 = pneg %p171
        $region26: #{tpu_custom_call.1} parent=11 // pred_check_branch
          %267 = sbr.rel (%p265) target = $region28
        $region27: #{tpu_custom_call.1} parent=11 // pred_region
          _
        $region28: #{tpu_custom_call.1} parent=11 // pred_fallthru
          _
        // Predicated region
        $region29: #{tpu_custom_call.1} parent=11 // pred_check
          %p268 = pneg %p192
        $region30: #{tpu_custom_call.1} parent=11 // pred_check_branch
          %270 = sbr.rel (%p268) target = $region32
        $region31: #{tpu_custom_call.1} parent=11 // pred_region
          _
        $region32: #{tpu_custom_call.1} parent=11 // pred_fallthru
          _
        // Predicated region
        $region33: #{tpu_custom_call.1} parent=11 // pred_check
          %p271 = pneg %p213
        $region34: #{tpu_custom_call.1} parent=11 // pred_check_branch
          %273 = sbr.rel (%p271) target = $region36
        $region35: #{tpu_custom_call.1} parent=11 // pred_region
          _
        $region36: #{tpu_custom_call.1} parent=11 // pred_fallthru
          _
      $region12: #{tpu_custom_call.1} parent=5 // pred_fallthru
        _
      %p274 = scmp.lt.s32.totalorder %s19, 2
      // Predicated region
      $region37: #{tpu_custom_call.1} parent=5 // pred_check
        %p275 = pneg %p274
      $region38: #{tpu_custom_call.1} parent=5 // pred_check_branch
        %277 = sbr.rel (%p275) target = $region40
      $region39: #{tpu_custom_call.1} parent=5 // pred_region
        // Predicated region
        $region41: #{tpu_custom_call.1} parent=39 // pred_check
          %p278 = pneg %p53
        $region42: #{tpu_custom_call.1} parent=39 // pred_check_branch
          %280 = sbr.rel (%p278) target = $region44
        $region43: #{tpu_custom_call.1} parent=39 // pred_region
          %s281 = smul.u32 2, %s27
          %p282 = scmp.lt.s32.totalorder %s26, 1
          %s283 = scalar_select %p282, %s26, 1
          %p284 = scmp.lt.s32.totalorder %s281, 1
          %s285 = scalar_select %p284, %s281, 1
          %s286 = smul.addr %s283, 2
          %s287 = sadd.s32 %s285, %s286
          %s288 = smul.addr %s287, 2
          %s289 = scalar_lea.vmem %s0, %s288
          %s290 = smul.u32 2, %s27
        $region44: #{tpu_custom_call.1} parent=39 // pred_fallthru
          _
        // Predicated region
        $region45: #{tpu_custom_call.1} parent=39 // pred_check
          %p291 = pneg %p81
        $region46: #{tpu_custom_call.1} parent=39 // pred_check_branch
          %293 = sbr.rel (%p291) target = $region48
        $region47: #{tpu_custom_call.1} parent=39 // pred_region
          %s294 = smul.u32 2, %s27
          %p295 = scmp.lt.s32.totalorder %s26, 1
          %s296 = scalar_select %p295, %s26, 1
          %p297 = scmp.lt.s32.totalorder %s294, 1
          %s298 = scalar_select %p297, %s294, 1
          %s299 = smul.addr %s296, 2
          %s300 = sadd.s32 %s298, %s299
          %s301 = smul.addr %s300, 2
          %s302 = scalar_lea.vmem %s1, %s301
          %s303 = smul.u32 2, %s27
        $region48: #{tpu_custom_call.1} parent=39 // pred_fallthru
          _
      $region40: #{tpu_custom_call.1} parent=5 // pred_fallthru
        _
      %p304 = scmp.le.s32.totalorder 1, %s19
      %p305 = scmp.lt.s32.totalorder %s19, 3
      %p306 = pnand %p304, %p305
      %p307 = pneg %p306
      // Predicated region
      $region49: #{tpu_custom_call.1} parent=5 // pred_check
        _
      $region50: #{tpu_custom_call.1} parent=5 // pred_check_branch
        %309 = sbr.rel (%p306) target = $region52
      $region51: #{tpu_custom_call.1} parent=5 // pred_region
        %s310 = ssub.s32 %s19, 1
        %s311 = smul.u32 2, %s29
        %p312 = scmp.lt.s32.totalorder %s28, 1
        %s313 = scalar_select %p312, %s28, 1
        %p314 = scmp.lt.s32.totalorder %s311, 1
        %s315 = scalar_select %p314, %s311, 1
        %s316 = smul.addr %s313, 2
        %s317 = sadd.s32 %s315, %s316
        %s318 = smul.addr %s317, 2
        %s319 = scalar_lea.vmem %s0, %s318
        %p320 = pneg %p59
        %p321 = pneg %p56
        %s322 = smul.u32 2, %s29
        %p323 = scmp.lt.s32.totalorder %s28, 1
        %s324 = scalar_select %p323, %s28, 1
        %p325 = scmp.lt.s32.totalorder %s322, 1
        %s326 = scalar_select %p325, %s322, 1
        %s327 = smul.addr %s324, 2
        %s328 = sadd.s32 %s326, %s327
        %s329 = smul.addr %s328, 2
        %s330 = scalar_lea.vmem %s1, %s329
        %p331 = pneg %p87
        %p332 = pneg %p84
        %p333 = pneg %p108
        %p334 = pneg %p105
        %p335 = pneg %p129
        %p336 = pneg %p126
        %p337 = pneg %p150
        %p338 = pneg %p147
        %p339 = pneg %p171
        %p340 = pneg %p168
        %p341 = pneg %p192
        %p342 = pneg %p189
        %p343 = pneg %p213
        %p344 = pneg %p210
        %p345 = pneg %p241
        %p346 = pneg %p238
        %s347 = sand.u32 %s228, 1
        %s348 = scalar_lea.sflag [#allocation4], %s347
        %s349 = sand.u32 %s228, 1
        %s350 = smul.addr %s349, 16
        %s351 = scalar_lea.vmem [#allocation3], %s350
        %s352 = smul.u32 2, %s29
        %p353 = scmp.lt.s32.totalorder %s28, 1
        %s354 = scalar_select %p353, %s28, 1
        %p355 = scmp.lt.s32.totalorder %s352, 1
        %s356 = scalar_select %p355, %s352, 1
        %s357 = smul.addr %s354, 2
        %s358 = sadd.s32 %s356, %s357
        %s359 = smul.addr %s358, 2
        %s360 = scalar_lea.vmem %s0, %s359
        %s361 = smul.u32 2, %s29
        %s362 = smul.u32 2, %s29
        %p363 = scmp.lt.s32.totalorder %s28, 1
        %s364 = scalar_select %p363, %s28, 1
        %p365 = scmp.lt.s32.totalorder %s362, 1
        %s366 = scalar_select %p365, %s362, 1
        %s367 = smul.addr %s364, 2
        %s368 = sadd.s32 %s366, %s367
        %s369 = smul.addr %s368, 2
        %s370 = scalar_lea.vmem %s1, %s369
        %s371 = smul.u32 2, %s29
        %s372 = smul.u32 2, %s29
        %v374 = vld [vmem:[%s360] sm:$0xf]
        %v375 = vld [vmem:[%s370] sm:$0xf]
        %v376 = vld [vmem:[%s3] sm:$0xf]
        %v377 = vld [vmem:[%s6] sm:$0xff]
        %379 = vset.pattern.permute.xlu0 0
        %380 = vperm.xlu0 %379, %v377
        %v381 = vpop.permute.xlu0 %380
        %v385 = vunpack.c.l.s4 1983009808
        %v386 = vunpack.c.0.s8 %v385
        %v387 = vlaneseq
        %v388 = vshrl.u32 %v387, 7
        %v389 = vsub.s32 %v386, %v388
        %v390 = vrot.slane %v375, %v389
        %v391 = vcombine.high %v390, %v390
        %vm392 = vcmask 31744
        %v394 = vsel %vm392, %v376, 0
        %vm396 = vcmask 1041408
        %v398 = vsel %vm396, %v390, 0
        %v401 = vsel %vm396, %v391, 0
        %403 = vmatprep.subr.bf16.mxu0 %v401
        %404 = vmatpush1.bf16.msra.mxu0 %v398
        %405 = vmatprep.subr.bf16.mxu0 0
        %406 = vmatpush1.bf16.msra.mxu0 0
        %407 = vmatprep.subr.bf16.mxu0 0
        %408 = vmatpush1.bf16.msra.mxu0 0
        %409 = vmatprep.subr.bf16.mxu0 0
        %410 = vmatpush1.bf16.msra.mxu0 0
        %411 = vmatprep.subr.bf16.mxu0 0
        %412 = vmatpush1.bf16.msra.mxu0 0
        %413 = vmatprep.subr.bf16.mxu0 0
        %414 = vmatpush1.bf16.msra.mxu0 0
        %415 = vmatprep.subr.bf16.mxu0 0
        %416 = vmatpush1.bf16.msra.mxu0 0
        %417 = vmatprep.subr.bf16.mxu0 0
        %418 = vmatpush1.bf16.msra.mxu0 0
        %419 = vmatprep.subr.bf16.mxu0 0
        %420 = vmatpush1.bf16.msra.mxu0 0
        %421 = vmatprep.subr.bf16.mxu0 0
        %422 = vmatpush1.bf16.msra.mxu0 0
        %423 = vmatprep.subr.bf16.mxu0 0
        %424 = vmatpush1.bf16.msra.mxu0 0
        %425 = vmatprep.subr.bf16.mxu0 0
        %426 = vmatpush1.bf16.msra.mxu0 0
        %427 = vmatprep.subr.bf16.mxu0 0
        %428 = vmatpush1.bf16.msra.mxu0 0
        %429 = vmatprep.subr.bf16.mxu0 0
        %430 = vmatpush1.bf16.msra.mxu0 0
        %431 = vmatprep.subr.bf16.mxu0 0
        %432 = vmatpush1.bf16.msra.mxu0 0
        %433 = vmatprep.subr.bf16.mxu0 0
        %434 = vmatpush1.bf16.msra.mxu0 0
        %435 = vmatprep.mubr.bf16.mxu0 0
        %436 = vmatmul.mubr.bf16.gmra.mrb[0].mxu0 %v394
        %v437 = vpop.f32.mrb[0].mxu0
        %v438 = vadd.f32 %v381, %v437
        %v439 = vpop.f32.mrb[0].mxu0
        %v440 = vadd.f32 %v381, %v439
        %v441 = vpop.f32.mrb[0].mxu0
        %v442 = vpop.f32.mrb[0].mxu0
        %443 = vdwg.mxu0
        %v444 = vld [vmem:[%s2] sm:$0xf]
        %v447 = vunpack.c.l.s4 1983009808
        %v448 = vunpack.c.0.s8 %v447
        %v449 = vlaneseq
        %v450 = vshrl.u32 %v449, 7
        %v451 = vsub.s32 %v448, %v450
        %v452 = vrot.slane %v374, %v451
        %v453 = vcombine.high %v452, %v452
        %v455 = vsel %vm392, %v444, 0
        %v458 = vsel %vm396, %v452, 0
        %v461 = vsel %vm396, %v453, 0
        %463 = vmatprep.subr.bf16.mxu0 %v461
        %464 = vmatpush1.bf16.msra.mxu0 %v458
        %465 = vmatprep.subr.bf16.mxu0 0
        %466 = vmatpush1.bf16.msra.mxu0 0
        %467 = vmatprep.subr.bf16.mxu0 0
        %468 = vmatpush1.bf16.msra.mxu0 0
        %469 = vmatprep.subr.bf16.mxu0 0
        %470 = vmatpush1.bf16.msra.mxu0 0
        %471 = vmatprep.subr.bf16.mxu0 0
        %472 = vmatpush1.bf16.msra.mxu0 0
        %473 = vmatprep.subr.bf16.mxu0 0
        %474 = vmatpush1.bf16.msra.mxu0 0
        %475 = vmatprep.subr.bf16.mxu0 0
        %476 = vmatpush1.bf16.msra.mxu0 0
        %477 = vmatprep.subr.bf16.mxu0 0
        %478 = vmatpush1.bf16.msra.mxu0 0
        %479 = vmatprep.subr.bf16.mxu0 0
        %480 = vmatpush1.bf16.msra.mxu0 0
        %481 = vmatprep.subr.bf16.mxu0 0
        %482 = vmatpush1.bf16.msra.mxu0 0
        %483 = vmatprep.subr.bf16.mxu0 0
        %484 = vmatpush1.bf16.msra.mxu0 0
        %485 = vmatprep.subr.bf16.mxu0 0
        %486 = vmatpush1.bf16.msra.mxu0 0
        %487 = vmatprep.subr.bf16.mxu0 0
        %488 = vmatpush1.bf16.msra.mxu0 0
        %489 = vmatprep.subr.bf16.mxu0 0
        %490 = vmatpush1.bf16.msra.mxu0 0
        %491 = vmatprep.subr.bf16.mxu0 0
        %492 = vmatpush1.bf16.msra.mxu0 0
        %493 = vmatprep.subr.bf16.mxu0 0
        %494 = vmatpush1.bf16.msra.mxu0 0
        %495 = vmatprep.mubr.bf16.mxu0 0
        %496 = vmatmul.mubr.bf16.gmra.mrb[0].mxu0 %v455
        %v497 = vpop.f32.mrb[0].mxu0
        %v498 = vadd.f32 %v438, %v497
        %v499 = vpop.f32.mrb[0].mxu0
        %v500 = vadd.f32 %v440, %v499
        %v501 = vpop.f32.mrb[0].mxu0
        %v502 = vpop.f32.mrb[0].mxu0
        %503 = vdwg.mxu0
        %v504 = vld [vmem:[%s5] sm:$0xff]
        %506 = vset.pattern.permute.xlu0 0
        %507 = vperm.xlu0 %506, %v504
        %v508 = vpop.permute.xlu0 %507
        %v510 = vadd.f32 %v498, %v508
        %v511 = vadd.f32 %v500, %v508
        %v512 = vmax.f32 %v510, 0.0
        %v513 = vmax.f32 %v511, 0.0
        %v514 = vld [vmem:[%s4] sm:$0xff]
        %516 = vset.pattern.permute.xlu0 0
        %517 = vperm.xlu0 %516, %v514
        %v518 = vpop.permute.xlu0 %517
        %v520 = vmul.f32 %v512, %v518
        %v521 = vmul.f32 %v513, %v518
        %v522 = vrot.slane %v520, 4
        %v523 = vadd.f32 %v520, %v522
        %v524 = vrot.slane %v523, 2
        %v525 = vadd.f32 %v523, %v524
        %v526 = vrot.slane %v525, 1
        %v527 = vadd.f32 %v525, %v526
        %v528 = vrot.slane %v521, 4
        %v529 = vadd.f32 %v521, %v528
        %v530 = vrot.slane %v529, 2
        %v531 = vadd.f32 %v529, %v530
        %v532 = vrot.slane %v531, 1
        %v533 = vadd.f32 %v531, %v532
        %v534 = vld [vmem:[#allocation2] sm:$0x1]
        %536 = vset.pattern.permute.xlu0 0
        %537 = vperm.xlu0 %536, %v534
        %v538 = vpop.permute.xlu0 %537
        %v540 = vlaneseq
        %v541 = vshrl.u32 %v540, 7
        %v542 = vsub.s32 0, %v541
        %v543 = vrot.slane %v538, %v542
        %v544 = vadd.f32 %v527, %v543
        %v545 = vadd.f32 %v533, %v543
        %v546 = vxor.u32 %v544, 2147483648
        %v547 = vxor.u32 %v545, 2147483648
        %v548 = vmul.f32 %v546, 1.442695
        %v549 = vpow.pop %v548
        %v550 = vmul.f32 %v547, 1.442695
        %v551 = vpow.pop %v550
        %v552 = vadd.f32 %v549, 1.0
        %v553 = vadd.f32 %v551, 1.0
        %v554 = vrcp.pop %v552
        %v555 = vmul.f32 1.0, %v554
        %v556 = vrcp.pop %v553
        %v557 = vmul.f32 1.0, %v556
        %v558 = vmul.f32 %v438, %v555
        %v559 = vmul.f32 %v440, %v557
        %560 = vst [vmem:[%s351] sm:$0xff] %v558
        %561 = vst [vmem:[%s351 + $0x8] sm:$0xff] %v559
        %s562 = sand.u32 %s228, 1
        %s563 = scalar_lea.sflag [#allocation4], %s562
        %s564 = sand.u32 %s228, 1
        %s565 = smul.addr %s564, 16
        %s566 = scalar_lea.vmem [#allocation3], %s565
        // Predicated region
        $region53: #{tpu_custom_call.1} parent=51 // pred_check
          %p567 = pneg %p238
        $region54: #{tpu_custom_call.1} parent=51 // pred_check_branch
          %569 = sbr.rel (%p567) target = $region56
        $region55: #{tpu_custom_call.1} parent=51 // pred_region
          %s570 = smul.u32 2, %s29
          %s572 = ssub.s32 256, 256
          %573 = vsyncadd %s563, %s572
          %s574 = smul.addr %s28, 2
          %s575 = sadd.s32 %s570, %s574
          %s576 = smul.addr %s575, 128
          %s577 = scalar_lea.hbm %s8, %s576
          %s579 = sshll.u32 %s566, 4
          %s580 = int_to_ptr.vmem [resolvable:$true] %s579
          %582 = dma.vmem_to_hbm [thread:$0]  %s580, 256, %s577, %s563
        $region56: #{tpu_custom_call.1} parent=51 // pred_fallthru
          _
      $region52: #{tpu_custom_call.1} parent=5 // pred_fallthru
        _
      %p583 = scmp.le.s32.totalorder 2, %s19
      // Predicated region
      $region57: #{tpu_custom_call.1} parent=5 // pred_check
        %p584 = pneg %p583
      $region58: #{tpu_custom_call.1} parent=5 // pred_check_branch
        %586 = sbr.rel (%p584) target = $region60
      $region59: #{tpu_custom_call.1} parent=5 // pred_region
        %s587 = ssub.s32 %s19, 2
        // Predicated region
        $region61: #{tpu_custom_call.1} parent=59 // pred_check
          %p588 = pneg %p244
        $region62: #{tpu_custom_call.1} parent=59 // pred_check_branch
          %590 = sbr.rel (%p588) target = $region64
        $region63: #{tpu_custom_call.1} parent=59 // pred_region
          %s591 = sand.u32 %s229, 1
          %s592 = scalar_lea.sflag [#allocation4], %s591
          %s593 = sand.u32 %s229, 1
          %s594 = smul.addr %s593, 16
          %s595 = scalar_lea.vmem [#allocation3], %s594
          %596 = dma.done %s592, 256
        $region64: #{tpu_custom_call.1} parent=59 // pred_fallthru
          _
      $region60: #{tpu_custom_call.1} parent=5 // pred_fallthru
        _
    $region6: #{tpu_custom_call.1} parent=1 // loop_footer
      %s23 = sadd.s32 1, %s19
    $region7: #{tpu_custom_call.1} parent=1 // loop_footer_branch
      %18 = sbr.rel target = $region3
    $region8: #{tpu_custom_call.1} parent=1 // loop_exit
      _
    %597 = vsyncpa [#allocation4], 1
    %s598 = scalar_lea.sflag [#allocation4], 1
    %599 = vsyncpa %s598, 1

</llo_original>
